<compile_context>
chip_gen: v7x
topology: tpu7x:2x2x1
jax: 0.10.0
libtpu: 0.0.40
codegen_flags: <defaults>
</compile_context>

<pallas_src>
import functools

import numpy as np

import jax
import jax.numpy as jnp
from jax.experimental import pallas as pl
from jax.experimental.pallas import tpu as pltpu

TRAIN_SIZE = (1, 3, 256, 256)  # matches `train_size` in the reference script


# --------------------------------------------------------------------------- helpers
def _tpu_vmem_limits():
    """(default scoped VMEM bytes, safe cap for vmem_limit_bytes) for this TPU gen."""
    phys = 128 << 20
    try:
        phys = int(pltpu.get_tpu_info().vmem_capacity_bytes)
    except Exception:  # pragma: no cover - interpret mode / exotic backends
        pass
    kind = ""
    try:
        kind = jax.devices()[0].device_kind.lower()
    except Exception:  # pragma: no cover
        pass
    if phys <= (64 << 20):
        # v7x-class: 64 MiB physical per TensorCore -> cap well below physical so the
        # compiler keeps scratch headroom.
        return 32 << 20, max(16 << 20, min(52 << 20, phys - (8 << 20)))
    # v5e (16 MiB default scoped) / v6e (32 MiB); both 128 MiB physical.
    default_scoped = (16 << 20) if "v5" in kind else (32 << 20)
    return default_scoped, 100 << 20


def _band_matrices(h, w, k1, k2, auto_pad, dtype, c_pad):
    """Exact 0/1 row/column box-filter operators (scale applied in the kernel epilogue).

    A: (R, h) with k1 consecutive ones per row.
    B: (w, c_pad) with k2 consecutive ones per column (zero-padded columns beyond the
       logical output width so stores stay lane-dense; cropped in the wrapper).
    With auto_pad the out-of-range output rows/cols reuse the edge window, which
    reproduces torch's replicate padding exactly (R = h, logical C = w).
    """
    ho, wo = h - k1 + 1, w - k2 + 1
    if auto_pad:
        pad_top = (h - ho) // 2
        pad_left = (w - wo) // 2
        starts_r = np.clip(np.arange(h) - pad_top, 0, ho - 1)
        starts_c = np.clip(np.arange(w) - pad_left, 0, wo - 1)
    else:
        starts_r = np.arange(ho)
        starts_c = np.arange(wo)

    jr = np.arange(h)
    a = ((jr[None, :] >= starts_r[:, None])
         & (jr[None, :] < starts_r[:, None] + k1)).astype(np.float32)

    ic = np.arange(w)
    b = ((ic[:, None] >= starts_c[None, :])
         & (ic[:, None] < starts_c[None, :] + k2)).astype(np.float32)
    if c_pad > b.shape[1]:
        b = np.pad(b, ((0, 0), (0, c_pad - b.shape[1])))

    return jnp.asarray(a, dtype=dtype), jnp.asarray(b, dtype=dtype)


def _block_vmem_bytes(cb, h, w, r_out, c_pad, in_itemsize, op_itemsize, batch_ok):
    """Per-grid-step VMEM: pipeline buffers + in-kernel intermediates (excl. A/B)."""
    need = 2 * cb * h * w * in_itemsize             # double-buffered x blocks
    need += 2 * cb * r_out * c_pad * in_itemsize    # double-buffered out blocks
    if op_itemsize != in_itemsize:
        need += cb * h * w * op_itemsize            # x -> op_dtype cast copy
    need += cb * h * c_pad * 4                      # f32 y from the W matmul
    if op_itemsize != 4:
        need += cb * h * c_pad * op_itemsize        # y cast copy (bf16 path only)
    if batch_ok:
        need += cb * r_out * h * op_itemsize        # broadcast A for batched dot
    need += cb * r_out * c_pad * 4                  # f32 accumulator (epilogue)
    return need


def _choose_c_blk(nc, h, w, r_out, c_pad, in_itemsize, op_itemsize, batch_ok,
                  vmem_target, ab_bytes):
    """Plane-block size: prefer a single grid step when everything fits (no per-step
    pipeline overhead); otherwise prefer an even step count so v7x's two TensorCores
    get balanced work."""
    max_cb = 128 if batch_ok else 16  # fallback path unrolls over planes: bound bloat

    def fits(d):
        return ab_bytes + _block_vmem_bytes(
            d, h, w, r_out, c_pad, in_itemsize, op_itemsize, batch_ok) <= vmem_target

    feasible = [d for d in range(1, nc + 1) if nc % d == 0 and d <= max_cb and fits(d)]
    if not feasible:
        return 1
    if nc in feasible:
        return nc
    even = [d for d in feasible if (nc // d) % 2 == 0]
    return max(even) if even else max(feasible)


# --------------------------------------------------------------------------- kernel
def _avgpool_kernel(x_ref, a_ref, b_ref, o_ref, *, inv_scale, batched):
    """x_ref: (CB, H, W); a_ref: (R, H); b_ref: (W, C); o_ref: (CB, R, C)."""
    cb, h, w = x_ref.shape
    r_out = a_ref.shape[0]
    c_pad = b_ref.shape[1]

    a = a_ref[...]
    b = b_ref[...]

    if batched:
        # Width matmul batched over all planes for MXU fill (B held as weights across
        # cb*H LHS rows), then one batched row matmul; scale once on the f32 result.
        x = x_ref[...].astype(a.dtype)
        y = jnp.dot(x.reshape(cb * h, w), b, preferred_element_type=jnp.float32)
        y = y.reshape(cb, h, c_pad).astype(a.dtype)
        a_b = jnp.broadcast_to(a[None], (cb, r_out, h))
        acc = jax.lax.dot_general(
            a_b, y, dimension_numbers=(((2,), (1,)), ((0,), (0,))),
            preferred_element_type=jnp.float32)
        o_ref[...] = (acc * inv_scale).astype(o_ref.dtype)
    else:
        # H not a multiple of the op-dtype sublane packing: the (cb,h,w)->(cb*h,w)
        # reshape would relayout, so process plane by plane.
        for p in range(cb):
            xp = x_ref[p].astype(a.dtype)
            yp = jnp.dot(xp, b, preferred_element_type=jnp.float32).astype(a.dtype)
            acc = jnp.dot(a, yp, preferred_element_type=jnp.float32)
            o_ref[p] = (acc * inv_scale).astype(o_ref.dtype)


def _avgpool_pallas(x, k1, k2, auto_pad):
    """Stride-1 box average pool (optionally with fused replicate padding)."""
    n, c, h, w = x.shape
    nc = n * c
    in_itemsize = x.dtype.itemsize

    # bf16 operands keep the MXU at full rate for bf16 models; band matrices are exact
    # 0/1 and accumulation + 1/(k1*k2) scaling stay in f32, so numerics only improve.
    op_dtype = jnp.bfloat16 if x.dtype == jnp.bfloat16 else jnp.float32
    op_itemsize = np.dtype(op_dtype).itemsize

    r_out = h if auto_pad else h - k1 + 1
    c_out = w if auto_pad else w - k2 + 1
    # Lane-dense output stores: pad the output column dim up to a multiple of 128
    # (cropped in the wrapper) whenever that costs < 2x extra writes.
    c_pad = (-(-c_out // 128) * 128) if (c_out % 128 != 0 and c_out >= 128) else c_out

    a_mat, b_mat = _band_matrices(h, w, k1, k2, auto_pad, op_dtype, c_pad)

    pack = 16 if op_dtype == jnp.bfloat16 else 8  # sublane packing of op_dtype
    batch_ok = (h % pack == 0)

    default_scoped, vmem_cap = _tpu_vmem_limits()
    ab_bytes = (r_out * h + w * c_pad) * op_itemsize  # A/B, single-buffered
    c_blk = _choose_c_blk(nc, h, w, r_out, c_pad, in_itemsize, op_itemsize,
                          batch_ok, int(0.8 * vmem_cap), ab_bytes)
    grid = (nc // c_blk,)

    # Conservative need (assume double-buffered A/B in case single-buffering is off).
    vmem_need = 2 * ab_bytes + _block_vmem_bytes(
        c_blk, h, w, r_out, c_pad, in_itemsize, op_itemsize, batch_ok)
    compiler_kwargs = {}
    if vmem_need > int(0.75 * default_scoped):
        # TODO(synk): above ~1k x 1k spatial, exploit the band structure (tile R/C and
        # feed only the [start, start+tile+k) slice of H/W) instead of only raising
        # the limit -- that cuts MXU work ~H/(tile+k) and shrinks A/B from O(H^2).
        compiler_kwargs["vmem_limit_bytes"] = int(
            min(max(vmem_need + (4 << 20), int(vmem_need * 1.25)), vmem_cap))

    flops = 2 * nc * h * c_pad * (w + r_out)
    bytes_accessed = (nc * h * w * in_itemsize
                      + nc * r_out * c_pad * in_itemsize
                      + (a_mat.size + b_mat.size) * op_itemsize)

    xr = x.reshape(nc, h, w)
    kernel = functools.partial(_avgpool_kernel,
                               inv_scale=1.0 / float(k1 * k2), batched=batch_ok)

    def call(single_buffer_ab):
        def const_spec(shape):
            # A/B never change across the grid: single-buffer them (halves their VMEM).
            kw = {"pipeline_mode": pl.Buffered(1)} if single_buffer_ab else {}
            return pl.BlockSpec(shape, lambda i: (0,) * len(shape), **kw)

        return pl.pallas_call(
            kernel,
            out_shape=jax.ShapeDtypeStruct((nc, r_out, c_pad), x.dtype),
            grid_spec=pltpu.PrefetchScalarGridSpec(
                num_scalar_prefetch=0,
                grid=grid,
                in_specs=[
                    pl.BlockSpec((c_blk, h, w), lambda i: (i, 0, 0)),
                    const_spec((r_out, h)),
                    const_spec((w, c_pad)),
                ],
                out_specs=pl.BlockSpec((c_blk, r_out, c_pad), lambda i: (i, 0, 0)),
            ),
            compiler_params=pltpu.CompilerParams(
                dimension_semantics=("parallel",), **compiler_kwargs),
            cost_estimate=pl.CostEstimate(
                flops=int(flops), transcendentals=0, bytes_accessed=int(bytes_accessed)),
        )(xr, a_mat, b_mat)

    try:
        out = call(True)
    except Exception:  # pragma: no cover - JAX without BlockSpec.pipeline_mode support
        out = call(False)

    out = out.reshape(n, c, r_out, c_pad)
    if c_pad != c_out:
        out = out[..., :c_out]
    return out


# --------------------------------------------------------------------------- module
class AvgPool2d:
    """JAX/Pallas port of the PyTorch AvgPool2d module (fast_imp=False path)."""

    def __init__(self, kernel_size=None, base_size=None, auto_pad=True, fast_imp=False):
        self.kernel_size = kernel_size
        self.base_size = base_size
        self.auto_pad = auto_pad
        self.fast_imp = fast_imp
        self.rs = [5, 4, 3, 2, 1]
        self.max_r1 = self.rs[0]
        self.max_r2 = self.rs[0]

    def __call__(self, x):
        # NOTE: like the PyTorch original, kernel_size is memoized on the first call
        # when derived from base_size; later calls with a different spatial size reuse it.
        if self.kernel_size is None and self.base_size:
            if isinstance(self.base_size, int):
                self.base_size = (self.base_size, self.base_size)
            self.kernel_size = list(self.base_size)
            self.kernel_size[0] = x.shape[2] * self.base_size[0] // TRAIN_SIZE[-2]
            self.kernel_size[1] = x.shape[3] * self.base_size[1] // TRAIN_SIZE[-1]
            self.max_r1 = max(1, self.rs[0] * x.shape[2] // TRAIN_SIZE[-2])
            self.max_r2 = max(1, self.rs[0] * x.shape[3] // TRAIN_SIZE[-1])

        if self.fast_imp:
            # TODO(synk): fast_imp strided cumsum + nearest interpolate path not ported.
            raise NotImplementedError("fast_imp=True path not implemented")

        n, c, h, w = x.shape
        k1 = min(h, self.kernel_size[0])
        k2 = min(w, self.kernel_size[1])
        # Replicate padding (auto_pad) is fused into the band matrices.
        return _avgpool_pallas(x, k1, k2, self.auto_pad)


# --------------------------------------------------------------------------- checks
def _reference(x, k1, k2, auto_pad=True):
    """Pure-JAX reference mirroring the PyTorch code path (fast_imp=False)."""
    n, c, h, w = x.shape
    s = jnp.cumsum(jnp.cumsum(x, axis=-1), axis=-2)
    s = jnp.pad(s, ((0, 0), (0, 0), (1, 0), (1, 0)))
    out = (s[:, :, k1:, k2:] + s[:, :, :-k1, :-k2]
           - s[:, :, :-k1, k2:] - s[:, :, k1:, :-k2]) / (k1 * k2)
    if auto_pad:
        _h, _w = out.shape[2:]
        out = jnp.pad(
            out,
            ((0, 0), (0, 0), ((h - _h) // 2, (h - _h + 1) // 2),
             ((w - _w) // 2, (w - _w + 1) // 2)),
            mode="edge",
        )
    return out


if __name__ == "__main__":
    key = jax.random.PRNGKey(0)
    x = jax.random.normal(key, (2, 4, 16, 16), dtype=jnp.float32)

    # base_size=80 -> kernel_size = 16 * 80 // 256 = 5 per spatial dim.
    pool = AvgPool2d(base_size=80, auto_pad=True, fast_imp=False)
    out = jax.block_until_ready(pool(x))
    ref = _reference(x, pool.kernel_size[0], pool.kernel_size[1], auto_pad=True)
    assert out.shape == x.shape, (out.shape, x.shape)
    assert jnp.allclose(out, ref, atol=1e-4, rtol=1e-4), float(jnp.max(jnp.abs(out - ref)))

    # auto_pad=False (valid) path.
    pool2 = AvgPool2d(kernel_size=[5, 5], auto_pad=False, fast_imp=False)
    out2 = jax.block_until_ready(pool2(x))
    ref2 = _reference(x, 5, 5, auto_pad=False)
    assert out2.shape == ref2.shape, (out2.shape, ref2.shape)
    assert jnp.allclose(out2, ref2, atol=1e-4, rtol=1e-4), float(jnp.max(jnp.abs(out2 - ref2)))

    # Non-multiple-of-128 output width -> exercises the lane-dense pad/crop path.
    x3 = jax.random.normal(jax.random.PRNGKey(1), (2, 2, 8, 160), dtype=jnp.float32)
    pool3 = AvgPool2d(kernel_size=[3, 3], auto_pad=True, fast_imp=False)
    out3 = jax.block_until_ready(pool3(x3))
    ref3 = _reference(x3, 3, 3, auto_pad=True)
    assert out3.shape == x3.shape, (out3.shape, x3.shape)
    assert jnp.allclose(out3, ref3, atol=1e-4, rtol=1e-4), float(jnp.max(jnp.abs(out3 - ref3)))

    print("KERNEL_OK")
</pallas_src>

<mosaic_0001>
module attributes {stable_mosaic.version = 11 : i64} {
  func.func @_avgpool_kernel(%arg0: i32, %arg1: memref<8x16x16xf32, #tpu.memory_space<vmem>>, %arg2: memref<16x16xf32, #tpu.memory_space<vmem>>, %arg3: memref<16x16xf32, #tpu.memory_space<vmem>>, %arg4: memref<8x16x16xf32, #tpu.memory_space<vmem>>) attributes {dimension_semantics = [#tpu.dimension_semantics<parallel>], iteration_bounds = array<i64: 1>, scalar_prefetch = 0 : i64, scratch_operands = 0 : i64, tpu.core_type = #tpu.core_type<tc>, window_params = [{transform_indices = @transform_0, window_bounds = array<i64: 8, 16, 16>}, {pipeline_mode = #tpu.pipeline_mode<synchronous>, transform_indices = @transform_1, window_bounds = array<i64: 16, 16>}, {pipeline_mode = #tpu.pipeline_mode<synchronous>, transform_indices = @transform_2, window_bounds = array<i64: 16, 16>}, {transform_indices = @transform_3, window_bounds = array<i64: 8, 16, 16>}]} {
    %c0 = arith.constant 0 : index
    %c0_0 = arith.constant 0 : index
    %0 = vector.load %arg2[%c0, %c0_0] : memref<16x16xf32, #tpu.memory_space<vmem>>, vector<16x16xf32>
    %c0_1 = arith.constant 0 : index
    %c0_2 = arith.constant 0 : index
    %1 = vector.load %arg3[%c0_1, %c0_2] : memref<16x16xf32, #tpu.memory_space<vmem>>, vector<16x16xf32>
    %c0_3 = arith.constant 0 : index
    %c0_4 = arith.constant 0 : index
    %c0_5 = arith.constant 0 : index
    %2 = vector.load %arg1[%c0_3, %c0_4, %c0_5] : memref<8x16x16xf32, #tpu.memory_space<vmem>>, vector<8x16x16xf32>
    %3 = vector.shape_cast %2 : vector<8x16x16xf32> to vector<128x16xf32>
    %cst = arith.constant dense<0.000000e+00> : vector<128x16xf32>
    %4 = tpu.matmul %3, %1, %cst {dimension_numbers = #tpu.dot_dimension_numbers<[1], [0], [0], [1], [0, 0, 1, 1], [], []>} : vector<128x16xf32>, vector<16x16xf32>, vector<128x16xf32> -> vector<128x16xf32>
    %5 = vector.shape_cast %4 : vector<128x16xf32> to vector<8x16x16xf32>
    %6 = vector.shape_cast %0 : vector<16x16xf32> to vector<1x16x16xf32>
    %7 = vector.shape_cast %6 : vector<1x16x16xf32> to vector<1x16x16xf32>
    %8 = vector.broadcast %7 : vector<1x16x16xf32> to vector<8x16x16xf32>
    %cst_6 = arith.constant dense<0.000000e+00> : vector<8x16x16xf32>
    %9 = tpu.matmul %8, %5, %cst_6 {dimension_numbers = #tpu.dot_dimension_numbers<[2], [1], [1], [2], [0, 0, 0, 1, 1, 2], [0], [0]>} : vector<8x16x16xf32>, vector<8x16x16xf32>, vector<8x16x16xf32> -> vector<8x16x16xf32>
    %cst_7 = arith.constant 4.000000e-02 : f32
    %10 = vector.broadcast %cst_7 : f32 to vector<8x16x16xf32>
    %11 = arith.mulf %9, %10 : vector<8x16x16xf32>
    %c0_8 = arith.constant 0 : index
    %c0_9 = arith.constant 0 : index
    %c0_10 = arith.constant 0 : index
    %12 = vector.load %arg4[%c0_8, %c0_9, %c0_10] : memref<8x16x16xf32, #tpu.memory_space<vmem>>, vector<8x16x16xf32>
    tpu.vector_store %arg4[%c0_8, %c0_9, %c0_10], %11 {strides = array<i32>} : memref<8x16x16xf32, #tpu.memory_space<vmem>>, vector<8x16x16xf32>,
    return
  }
  func.func @transform_0(%arg0: i32) -> (i32, i32, i32) {
    %c0_i32 = arith.constant 0 : i32
    %c0_i32_0 = arith.constant 0 : i32
    %c0_i32_1 = arith.constant 0 : i32
    return %arg0, %c0_i32, %c0_i32_0 : i32, i32, i32
  }
  func.func @transform_1(%arg0: i32) -> (i32, i32) {
    %c0_i32 = arith.constant 0 : i32
    %c0_i32_0 = arith.constant 0 : i32
    %c0_i32_1 = arith.constant 0 : i32
    return %c0_i32, %c0_i32_0 : i32, i32
  }
  func.func @transform_2(%arg0: i32) -> (i32, i32) {
    %c0_i32 = arith.constant 0 : i32
    %c0_i32_0 = arith.constant 0 : i32
    %c0_i32_1 = arith.constant 0 : i32
    return %c0_i32, %c0_i32_0 : i32, i32
  }
  func.func @transform_3(%arg0: i32) -> (i32, i32, i32) {
    %c0_i32 = arith.constant 0 : i32
    %c0_i32_0 = arith.constant 0 : i32
    %c0_i32_1 = arith.constant 0 : i32
    return %arg0, %c0_i32, %c0_i32_0 : i32, i32, i32
  }
}

module attributes {stable_mosaic.version = 11 : i64} {
  func.func @_avgpool_kernel(%arg0: i32, %arg1: memref<8x16x16xf32, #tpu.memory_space<vmem>>, %arg2: memref<16x16xf32, #tpu.memory_space<vmem>>, %arg3: memref<16x16xf32, #tpu.memory_space<vmem>>, %arg4: memref<8x16x16xf32, #tpu.memory_space<vmem>>) attributes {dimension_semantics = [#tpu.dimension_semantics<parallel>], iteration_bounds = array<i64: 1>, scalar_prefetch = 0 : i64, scratch_operands = 0 : i64, tpu.core_type = #tpu.core_type<tc>, window_params = [{transform_indices = @transform_0, window_bounds = array<i64: 8, 16, 16>}, {pipeline_mode = #tpu.pipeline_mode<synchronous>, transform_indices = @transform_1, window_bounds = array<i64: 16, 16>}, {pipeline_mode = #tpu.pipeline_mode<synchronous>, transform_indices = @transform_2, window_bounds = array<i64: 16, 16>}, {transform_indices = @transform_3, window_bounds = array<i64: 8, 16, 16>}]} {
    %c0 = arith.constant 0 : index
    %c0_0 = arith.constant 0 : index
    %0 = vector.load %arg2[%c0, %c0_0] : memref<16x16xf32, #tpu.memory_space<vmem>>, vector<16x16xf32>
    %c0_1 = arith.constant 0 : index
    %c0_2 = arith.constant 0 : index
    %1 = vector.load %arg3[%c0_1, %c0_2] : memref<16x16xf32, #tpu.memory_space<vmem>>, vector<16x16xf32>
    %c0_3 = arith.constant 0 : index
    %c0_4 = arith.constant 0 : index
    %c0_5 = arith.constant 0 : index
    %2 = vector.load %arg1[%c0_3, %c0_4, %c0_5] : memref<8x16x16xf32, #tpu.memory_space<vmem>>, vector<8x16x16xf32>
    %3 = vector.shape_cast %2 : vector<8x16x16xf32> to vector<128x16xf32>
    %cst = arith.constant dense<0.000000e+00> : vector<128x16xf32>
    %4 = tpu.matmul %3, %1, %cst {dimension_numbers = #tpu.dot_dimension_numbers<[1], [0], [0], [1], [0, 0, 1, 1], [], []>} : vector<128x16xf32>, vector<16x16xf32>, vector<128x16xf32> -> vector<128x16xf32>
    %5 = vector.shape_cast %4 : vector<128x16xf32> to vector<8x16x16xf32>
    %6 = vector.shape_cast %0 : vector<16x16xf32> to vector<1x16x16xf32>
    %7 = vector.shape_cast %6 : vector<1x16x16xf32> to vector<1x16x16xf32>
    %8 = vector.broadcast %7 : vector<1x16x16xf32> to vector<8x16x16xf32>
    %cst_6 = arith.constant dense<0.000000e+00> : vector<8x16x16xf32>
    %9 = tpu.matmul %8, %5, %cst_6 {dimension_numbers = #tpu.dot_dimension_numbers<[2], [1], [1], [2], [0, 0, 0, 1, 1, 2], [0], [0]>} : vector<8x16x16xf32>, vector<8x16x16xf32>, vector<8x16x16xf32> -> vector<8x16x16xf32>
    %cst_7 = arith.constant 4.000000e-02 : f32
    %10 = vector.broadcast %cst_7 : f32 to vector<8x16x16xf32>
    %11 = arith.mulf %9, %10 : vector<8x16x16xf32>
    %c0_8 = arith.constant 0 : index
    %c0_9 = arith.constant 0 : index
    %c0_10 = arith.constant 0 : index
    %12 = vector.load %arg4[%c0_8, %c0_9, %c0_10] : memref<8x16x16xf32, #tpu.memory_space<vmem>>, vector<8x16x16xf32>
    tpu.vector_store %arg4[%c0_8, %c0_9, %c0_10], %11 {strides = array<i32>} : memref<8x16x16xf32, #tpu.memory_space<vmem>>, vector<8x16x16xf32>,
    return
  }
  func.func @transform_0(%arg0: i32) -> (i32, i32, i32) {
    %c0_i32 = arith.constant 0 : i32
    %c0_i32_0 = arith.constant 0 : i32
    %c0_i32_1 = arith.constant 0 : i32
    return %arg0, %c0_i32, %c0_i32_0 : i32, i32, i32
  }
  func.func @transform_1(%arg0: i32) -> (i32, i32) {
    %c0_i32 = arith.constant 0 : i32
    %c0_i32_0 = arith.constant 0 : i32
    %c0_i32_1 = arith.constant 0 : i32
    return %c0_i32, %c0_i32_0 : i32, i32
  }
  func.func @transform_2(%arg0: i32) -> (i32, i32) {
    %c0_i32 = arith.constant 0 : i32
    %c0_i32_0 = arith.constant 0 : i32
    %c0_i32_1 = arith.constant 0 : i32
    return %c0_i32, %c0_i32_0 : i32, i32
  }
  func.func @transform_3(%arg0: i32) -> (i32, i32, i32) {
    %c0_i32 = arith.constant 0 : i32
    %c0_i32_0 = arith.constant 0 : i32
    %c0_i32_1 = arith.constant 0 : i32
    return %arg0, %c0_i32, %c0_i32_0 : i32, i32, i32
  }
}

</mosaic_0001>

<llo_original>
// kernel: tpu_custom_call.1
$region0: #{tpu_custom_call.1}
  #allocation0 [shape = 'u32[]', space=smem, size = 0x4, offset = 0x4, fixed_abs, tag = 'smem constant byte address 0x4 - core index']
  #allocation1 [shape = 'u32[144,128]{1,0:T(1,128)}', space=vmem, size = 0x12000, scoped, tag = 'internal scratch']
  %s0 = inlined_call_operand.hbm [shape: f32[8,16,16], index: 0, kind: input, shape index: {}]
  %s1 = inlined_call_operand.hbm [shape: f32[16,16], index: 1, kind: input, shape index: {}]
  %s2 = inlined_call_operand.hbm [shape: f32[16,16], index: 2, kind: input, shape index: {}]
  %s3 = inlined_call_operand.hbm [shape: f32[8,16,16], index: 3, kind: output, shape index: {}]
  %s4 = sld [smem:[#allocation0]]
  $region34: #{tpu_custom_call.1} parent=0
    _
  %s6 = ssub.s32 1, %s4
  %s7 = scalar_select 0, %s6, %s4
  $region1: #{tpu_custom_call.1} parent=0
    #allocation2 [shape = 'u8[65536]{0}', space=vmem, size = 0x10000, scoped, tag = 'input window, operand 0, single buffered']
    #allocation3 [shape = 's32[1]{0}', space=sflag, size = 0x4, scoped, tag = 'scoped memory for tpu_custom_call.1']
    #allocation4 [shape = 's32[1]{0}', space=sflag, size = 0x4, scoped, tag = 'scoped memory for tpu_custom_call.1']
    #allocation5 [shape = 'u8[8192]{0}', space=vmem, size = 0x2000, scoped, tag = 'input window, operand 1, single buffered']
    #allocation6 [shape = 's32[1]{0}', space=sflag, size = 0x4, scoped, tag = 'scoped memory for tpu_custom_call.1']
    #allocation7 [shape = 'u8[8192]{0}', space=vmem, size = 0x2000, scoped, tag = 'input window, operand 2, single buffered']
    #allocation8 [shape = 'u8[65536]{0}', space=vmem, size = 0x10000, scoped, tag = 'output window, operand 0, single buffered']
    %8 = vsyncpa [#allocation3], 0
    %9 = vsyncpa [#allocation6], 0
    %10 = vsyncpa [#allocation4], 0
    // Predicated region
    $region2: #{tpu_custom_call.1} parent=1 // pred_check
      _
    $region3: #{tpu_custom_call.1} parent=1 // pred_check_branch
      %12 = sbr.rel (0) target = $region5
    $region4: #{tpu_custom_call.1} parent=1 // pred_region
      %s14 = ssub.s32 2048, 2048
      %15 = vsyncadd [#allocation3], %s14
      %s16 = sshll.u32 [#allocation2], 4
      %s17 = int_to_ptr.vmem [resolvable:$true] %s16
      %22 = dma.hbm_to_vmem [thread:$0]  %s0, 2048, %s17, [#allocation3], 128, 128, 8
    $region5: #{tpu_custom_call.1} parent=1 // pred_fallthru
      _
    // Predicated region
    $region6: #{tpu_custom_call.1} parent=1 // pred_check
      _
    $region7: #{tpu_custom_call.1} parent=1 // pred_check_branch
      %24 = sbr.rel (0) target = $region9
    $region8: #{tpu_custom_call.1} parent=1 // pred_region
      %s26 = ssub.s32 256, 256
      %27 = vsyncadd [#allocation6], %s26
      %s28 = sshll.u32 [#allocation5], 4
      %s29 = int_to_ptr.vmem [resolvable:$true] %s28
      %34 = dma.hbm_to_vmem [thread:$0]  %s1, 256, %s29, [#allocation6], 128, 128, 8
    $region9: #{tpu_custom_call.1} parent=1 // pred_fallthru
      _
    // Predicated region
    $region10: #{tpu_custom_call.1} parent=1 // pred_check
      _
    $region11: #{tpu_custom_call.1} parent=1 // pred_check_branch
      %36 = sbr.rel (0) target = $region13
    $region12: #{tpu_custom_call.1} parent=1 // pred_region
      %s38 = ssub.s32 256, 256
      %39 = vsyncadd [#allocation6], %s38
      %s40 = sshll.u32 [#allocation7], 4
      %s41 = int_to_ptr.vmem [resolvable:$true] %s40
      %46 = dma.hbm_to_vmem [thread:$0]  %s2, 256, %s41, [#allocation6], 128, 128, 8
    $region13: #{tpu_custom_call.1} parent=1 // pred_fallthru
      _
    // Predicated region
    $region14: #{tpu_custom_call.1} parent=1 // pred_check
      _
    $region15: #{tpu_custom_call.1} parent=1 // pred_check_branch
      %48 = sbr.rel (0) target = $region17
    $region16: #{tpu_custom_call.1} parent=1 // pred_region
      %49 = dma.done [#allocation3], 2048
    $region17: #{tpu_custom_call.1} parent=1 // pred_fallthru
      _
    // Predicated region
    $region18: #{tpu_custom_call.1} parent=1 // pred_check
      _
    $region19: #{tpu_custom_call.1} parent=1 // pred_check_branch
      %51 = sbr.rel (0) target = $region21
    $region20: #{tpu_custom_call.1} parent=1 // pred_region
      %52 = dma.done [#allocation6], 256
    $region21: #{tpu_custom_call.1} parent=1 // pred_fallthru
      _
    // Predicated region
    $region22: #{tpu_custom_call.1} parent=1 // pred_check
      _
    $region23: #{tpu_custom_call.1} parent=1 // pred_check_branch
      %54 = sbr.rel (0) target = $region25
    $region24: #{tpu_custom_call.1} parent=1 // pred_region
      %55 = dma.done [#allocation6], 256
    $region25: #{tpu_custom_call.1} parent=1 // pred_fallthru
      _
    %v56 = vld [vmem:[#allocation5] sm:$0xff]
    %v57 = vld [vmem:[#allocation5 + $0x8] sm:$0xff]
    %v58 = vld [vmem:[#allocation7] sm:$0xff]
    %v59 = vld [vmem:[#allocation7 + $0x8] sm:$0xff]
    %v60 = vld [vmem:[#allocation2] sm:$0xff]
    %v61 = vld [vmem:[#allocation2 + $0x8] sm:$0xff]
    %v62 = vld [vmem:[#allocation2 + $0x10] sm:$0xff]
    %v63 = vld [vmem:[#allocation2 + $0x18] sm:$0xff]
    %v64 = vld [vmem:[#allocation2 + $0x20] sm:$0xff]
    %v65 = vld [vmem:[#allocation2 + $0x28] sm:$0xff]
    %v66 = vld [vmem:[#allocation2 + $0x30] sm:$0xff]
    %v67 = vld [vmem:[#allocation2 + $0x38] sm:$0xff]
    %v68 = vld [vmem:[#allocation2 + $0x40] sm:$0xff]
    %v69 = vld [vmem:[#allocation2 + $0x48] sm:$0xff]
    %v70 = vld [vmem:[#allocation2 + $0x50] sm:$0xff]
    %v71 = vld [vmem:[#allocation2 + $0x58] sm:$0xff]
    %v72 = vld [vmem:[#allocation2 + $0x60] sm:$0xff]
    %v73 = vld [vmem:[#allocation2 + $0x68] sm:$0xff]
    %v74 = vld [vmem:[#allocation2 + $0x70] sm:$0xff]
    %v75 = vld [vmem:[#allocation2 + $0x78] sm:$0xff]
    %vm76 = vcmask 130048
    %v78 = vsel %vm76, %v60, 0
    %v81 = vsel %vm76, %v61, 0
    %v84 = vsel %vm76, %v62, 0
    %v87 = vsel %vm76, %v63, 0
    %v90 = vsel %vm76, %v64, 0
    %v93 = vsel %vm76, %v65, 0
    %v96 = vsel %vm76, %v66, 0
    %v99 = vsel %vm76, %v67, 0
    %v102 = vsel %vm76, %v68, 0
    %v105 = vsel %vm76, %v69, 0
    %v108 = vsel %vm76, %v70, 0
    %v111 = vsel %vm76, %v71, 0
    %v114 = vsel %vm76, %v72, 0
    %v117 = vsel %vm76, %v73, 0
    %v120 = vsel %vm76, %v74, 0
    %v123 = vsel %vm76, %v75, 0
    %125 = vmatprep.subr.mxu0 0.0
    %126 = vmatpush1.msra.mxu0 %v58
    %127 = vmatprep.subr.mxu0 0.0
    %128 = vmatpush1.msra.mxu0 %v59
    %129 = vmatprep.subr.mxu0 0.0
    %130 = vmatpush1.msra.mxu0 0.0
    %131 = vmatprep.subr.mxu0 0.0
    %132 = vmatpush1.msra.mxu0 0.0
    %133 = vmatprep.subr.mxu0 0.0
    %134 = vmatpush1.msra.mxu0 0.0
    %135 = vmatprep.subr.mxu0 0.0
    %136 = vmatpush1.msra.mxu0 0.0
    %137 = vmatprep.subr.mxu0 0.0
    %138 = vmatpush1.msra.mxu0 0.0
    %139 = vmatprep.subr.mxu0 0.0
    %140 = vmatpush1.msra.mxu0 0.0
    %141 = vmatprep.subr.mxu0 0.0
    %142 = vmatpush1.msra.mxu0 0.0
    %143 = vmatprep.subr.mxu0 0.0
    %144 = vmatpush1.msra.mxu0 0.0
    %145 = vmatprep.subr.mxu0 0.0
    %146 = vmatpush1.msra.mxu0 0.0
    %147 = vmatprep.subr.mxu0 0.0
    %148 = vmatpush1.msra.mxu0 0.0
    %149 = vmatprep.subr.mxu0 0.0
    %150 = vmatpush1.msra.mxu0 0.0
    %151 = vmatprep.subr.mxu0 0.0
    %152 = vmatpush1.msra.mxu0 0.0
    %153 = vmatprep.subr.mxu0 0.0
    %154 = vmatpush1.msra.mxu0 0.0
    %155 = vmatprep.subr.mxu0 0.0
    %156 = vmatpush1.msra.mxu0 0.0
    %157 = vmatprep.subr.mxu0 0.0
    %158 = vmatpush1.msra.mxu0 0.0
    %159 = vmatprep.subr.mxu0 0.0
    %160 = vmatpush1.msra.mxu0 0.0
    %161 = vmatprep.subr.mxu0 0.0
    %162 = vmatpush1.msra.mxu0 0.0
    %163 = vmatprep.subr.mxu0 0.0
    %164 = vmatpush1.msra.mxu0 0.0
    %165 = vmatprep.subr.mxu0 0.0
    %166 = vmatpush1.msra.mxu0 0.0
    %167 = vmatprep.subr.mxu0 0.0
    %168 = vmatpush1.msra.mxu0 0.0
    %169 = vmatprep.subr.mxu0 0.0
    %170 = vmatpush1.msra.mxu0 0.0
    %171 = vmatprep.subr.mxu0 0.0
    %172 = vmatpush1.msra.mxu0 0.0
    %173 = vmatprep.subr.mxu0 0.0
    %174 = vmatpush1.msra.mxu0 0.0
    %175 = vmatprep.subr.mxu0 0.0
    %176 = vmatpush1.msra.mxu0 0.0
    %177 = vmatprep.subr.mxu0 0.0
    %178 = vmatpush1.msra.mxu0 0.0
    %179 = vmatprep.subr.mxu0 0.0
    %180 = vmatpush1.msra.mxu0 0.0
    %181 = vmatprep.subr.mxu0 0.0
    %182 = vmatpush1.msra.mxu0 0.0
    %183 = vmatprep.subr.mxu0 0.0
    %184 = vmatpush1.msra.mxu0 0.0
    %185 = vmatprep.subr.mxu0 0.0
    %186 = vmatpush1.msra.mxu0 0.0
    %187 = vmatprep.subr.mxu0 0.0
    %188 = vmatpush1.msra.mxu0 0.0
    %189 = vmatprep.mubr.f32.mxu0 0.0
    %190 = vmatmul.mubr.f32.gmra.mrb[0].mxu0 %v78
    %v191 = vpop.f32.mrb[0].mxu0
    %v192 = vadd.f32 0.0, %v191
    %v193 = vpop.f32.mrb[0].mxu0
    %194 = vmatprep.mubr.f32.mxu0 0.0
    %195 = vmatmul.mubr.f32.gmra.mrb[0].mxu0 %v81
    %v196 = vpop.f32.mrb[0].mxu0
    %v197 = vadd.f32 0.0, %v196
    %v198 = vpop.f32.mrb[0].mxu0
    %199 = vmatprep.mubr.f32.mxu0 0.0
    %200 = vmatmul.mubr.f32.gmra.mrb[0].mxu0 %v84
    %v201 = vpop.f32.mrb[0].mxu0
    %v202 = vadd.f32 0.0, %v201
    %v203 = vpop.f32.mrb[0].mxu0
    %204 = vmatprep.mubr.f32.mxu0 0.0
    %205 = vmatmul.mubr.f32.gmra.mrb[0].mxu0 %v87
    %v206 = vpop.f32.mrb[0].mxu0
    %v207 = vadd.f32 0.0, %v206
    %v208 = vpop.f32.mrb[0].mxu0
    %209 = vmatprep.mubr.f32.mxu0 0.0
    %210 = vmatmul.mubr.f32.gmra.mrb[0].mxu0 %v90
    %v211 = vpop.f32.mrb[0].mxu0
    %v212 = vadd.f32 0.0, %v211
    %v213 = vpop.f32.mrb[0].mxu0
    %214 = vmatprep.mubr.f32.mxu0 0.0
    %215 = vmatmul.mubr.f32.gmra.mrb[0].mxu0 %v93
    %v216 = vpop.f32.mrb[0].mxu0
    %v217 = vadd.f32 0.0, %v216
    %v218 = vpop.f32.mrb[0].mxu0
    %219 = vmatprep.mubr.f32.mxu0 0.0
    %220 = vmatmul.mubr.f32.gmra.mrb[0].mxu0 %v96
    %v221 = vpop.f32.mrb[0].mxu0
    %v222 = vadd.f32 0.0, %v221
    %v223 = vpop.f32.mrb[0].mxu0
    %224 = vmatprep.mubr.f32.mxu0 0.0
    %225 = vmatmul.mubr.f32.gmra.mrb[0].mxu0 %v99
    %v226 = vpop.f32.mrb[0].mxu0
    %v227 = vadd.f32 0.0, %v226
    %v228 = vpop.f32.mrb[0].mxu0
    %229 = vmatprep.mubr.f32.mxu0 0.0
    %230 = vmatmul.mubr.f32.gmra.mrb[0].mxu0 %v102
    %v231 = vpop.f32.mrb[0].mxu0
    %v232 = vadd.f32 0.0, %v231
    %v233 = vpop.f32.mrb[0].mxu0
    %234 = vmatprep.mubr.f32.mxu0 0.0
    %235 = vmatmul.mubr.f32.gmra.mrb[0].mxu0 %v105
    %v236 = vpop.f32.mrb[0].mxu0
    %v237 = vadd.f32 0.0, %v236
    %v238 = vpop.f32.mrb[0].mxu0
    %239 = vmatprep.mubr.f32.mxu0 0.0
    %240 = vmatmul.mubr.f32.gmra.mrb[0].mxu0 %v108
    %v241 = vpop.f32.mrb[0].mxu0
    %v242 = vadd.f32 0.0, %v241
    %v243 = vpop.f32.mrb[0].mxu0
    %244 = vmatprep.mubr.f32.mxu0 0.0
    %245 = vmatmul.mubr.f32.gmra.mrb[0].mxu0 %v111
    %v246 = vpop.f32.mrb[0].mxu0
    %v247 = vadd.f32 0.0, %v246
    %v248 = vpop.f32.mrb[0].mxu0
    %249 = vmatprep.mubr.f32.mxu0 0.0
    %250 = vmatmul.mubr.f32.gmra.mrb[0].mxu0 %v114
    %v251 = vpop.f32.mrb[0].mxu0
    %v252 = vadd.f32 0.0, %v251
    %v253 = vpop.f32.mrb[0].mxu0
    %254 = vmatprep.mubr.f32.mxu0 0.0
    %255 = vmatmul.mubr.f32.gmra.mrb[0].mxu0 %v117
    %v256 = vpop.f32.mrb[0].mxu0
    %v257 = vadd.f32 0.0, %v256
    %v258 = vpop.f32.mrb[0].mxu0
    %259 = vmatprep.mubr.f32.mxu0 0.0
    %260 = vmatmul.mubr.f32.gmra.mrb[0].mxu0 %v120
    %v261 = vpop.f32.mrb[0].mxu0
    %v262 = vadd.f32 0.0, %v261
    %v263 = vpop.f32.mrb[0].mxu0
    %264 = vmatprep.mubr.f32.mxu0 0.0
    %265 = vmatmul.mubr.f32.gmra.mrb[0].mxu0 %v123
    %v266 = vpop.f32.mrb[0].mxu0
    %v267 = vadd.f32 0.0, %v266
    %v268 = vpop.f32.mrb[0].mxu0
    %269 = vdwg.mxu0
    %v271 = vsel %vm76, %v56, 0
    %v274 = vsel %vm76, %v57, 0
    %276 = vmatprep.subr.mxu0 0.0
    %277 = vmatpush1.msra.mxu0 %v192
    %278 = vmatprep.subr.mxu0 0.0
    %279 = vmatpush1.msra.mxu0 %v197
    %280 = vmatprep.subr.mxu0 0.0
    %281 = vmatpush1.msra.mxu0 0.0
    %282 = vmatprep.subr.mxu0 0.0
    %283 = vmatpush1.msra.mxu0 0.0
    %284 = vmatprep.subr.mxu0 0.0
    %285 = vmatpush1.msra.mxu0 0.0
    %286 = vmatprep.subr.mxu0 0.0
    %287 = vmatpush1.msra.mxu0 0.0
    %288 = vmatprep.subr.mxu0 0.0
    %289 = vmatpush1.msra.mxu0 0.0
    %290 = vmatprep.subr.mxu0 0.0
    %291 = vmatpush1.msra.mxu0 0.0
    %292 = vmatprep.subr.mxu0 0.0
    %293 = vmatpush1.msra.mxu0 0.0
    %294 = vmatprep.subr.mxu0 0.0
    %295 = vmatpush1.msra.mxu0 0.0
    %296 = vmatprep.subr.mxu0 0.0
    %297 = vmatpush1.msra.mxu0 0.0
    %298 = vmatprep.subr.mxu0 0.0
    %299 = vmatpush1.msra.mxu0 0.0
    %300 = vmatprep.subr.mxu0 0.0
    %301 = vmatpush1.msra.mxu0 0.0
    %302 = vmatprep.subr.mxu0 0.0
    %303 = vmatpush1.msra.mxu0 0.0
    %304 = vmatprep.subr.mxu0 0.0
    %305 = vmatpush1.msra.mxu0 0.0
    %306 = vmatprep.subr.mxu0 0.0
    %307 = vmatpush1.msra.mxu0 0.0
    %308 = vmatprep.subr.mxu0 0.0
    %309 = vmatpush1.msra.mxu0 0.0
    %310 = vmatprep.subr.mxu0 0.0
    %311 = vmatpush1.msra.mxu0 0.0
    %312 = vmatprep.subr.mxu0 0.0
    %313 = vmatpush1.msra.mxu0 0.0
    %314 = vmatprep.subr.mxu0 0.0
    %315 = vmatpush1.msra.mxu0 0.0
    %316 = vmatprep.subr.mxu0 0.0
    %317 = vmatpush1.msra.mxu0 0.0
    %318 = vmatprep.subr.mxu0 0.0
    %319 = vmatpush1.msra.mxu0 0.0
    %320 = vmatprep.subr.mxu0 0.0
    %321 = vmatpush1.msra.mxu0 0.0
    %322 = vmatprep.subr.mxu0 0.0
    %323 = vmatpush1.msra.mxu0 0.0
    %324 = vmatprep.subr.mxu0 0.0
    %325 = vmatpush1.msra.mxu0 0.0
    %326 = vmatprep.subr.mxu0 0.0
    %327 = vmatpush1.msra.mxu0 0.0
    %328 = vmatprep.subr.mxu0 0.0
    %329 = vmatpush1.msra.mxu0 0.0
    %330 = vmatprep.subr.mxu0 0.0
    %331 = vmatpush1.msra.mxu0 0.0
    %332 = vmatprep.subr.mxu0 0.0
    %333 = vmatpush1.msra.mxu0 0.0
    %334 = vmatprep.subr.mxu0 0.0
    %335 = vmatpush1.msra.mxu0 0.0
    %336 = vmatprep.subr.mxu0 0.0
    %337 = vmatpush1.msra.mxu0 0.0
    %338 = vmatprep.subr.mxu0 0.0
    %339 = vmatpush1.msra.mxu0 0.0
    %340 = vmatprep.mubr.f32.mxu0 0.0
    %341 = vmatmul.mubr.f32.gmra.mrb[0].mxu0 %v271
    %v342 = vpop.f32.mrb[0].mxu0
    %v343 = vadd.f32 0.0, %v342
    %v344 = vpop.f32.mrb[0].mxu0
    %345 = vmatprep.mubr.f32.mxu0 0.0
    %346 = vmatmul.mubr.f32.gmra.mrb[0].mxu0 %v274
    %v347 = vpop.f32.mrb[0].mxu0
    %v348 = vadd.f32 0.0, %v347
    %v349 = vpop.f32.mrb[0].mxu0
    %350 = vdwg.mxu0
    %351 = vmatprep.subr.mxu0 0.0
    %352 = vmatpush1.msra.mxu0 %v202
    %353 = vmatprep.subr.mxu0 0.0
    %354 = vmatpush1.msra.mxu0 %v207
    %355 = vmatprep.subr.mxu0 0.0
    %356 = vmatpush1.msra.mxu0 0.0
    %357 = vmatprep.subr.mxu0 0.0
    %358 = vmatpush1.msra.mxu0 0.0
    %359 = vmatprep.subr.mxu0 0.0
    %360 = vmatpush1.msra.mxu0 0.0
    %361 = vmatprep.subr.mxu0 0.0
    %362 = vmatpush1.msra.mxu0 0.0
    %363 = vmatprep.subr.mxu0 0.0
    %364 = vmatpush1.msra.mxu0 0.0
    %365 = vmatprep.subr.mxu0 0.0
    %366 = vmatpush1.msra.mxu0 0.0
    %367 = vmatprep.subr.mxu0 0.0
    %368 = vmatpush1.msra.mxu0 0.0
    %369 = vmatprep.subr.mxu0 0.0
    %370 = vmatpush1.msra.mxu0 0.0
    %371 = vmatprep.subr.mxu0 0.0
    %372 = vmatpush1.msra.mxu0 0.0
    %373 = vmatprep.subr.mxu0 0.0
    %374 = vmatpush1.msra.mxu0 0.0
    %375 = vmatprep.subr.mxu0 0.0
    %376 = vmatpush1.msra.mxu0 0.0
    %377 = vmatprep.subr.mxu0 0.0
    %378 = vmatpush1.msra.mxu0 0.0
    %379 = vmatprep.subr.mxu0 0.0
    %380 = vmatpush1.msra.mxu0 0.0
    %381 = vmatprep.subr.mxu0 0.0
    %382 = vmatpush1.msra.mxu0 0.0
    %383 = vmatprep.subr.mxu0 0.0
    %384 = vmatpush1.msra.mxu0 0.0
    %385 = vmatprep.subr.mxu0 0.0
    %386 = vmatpush1.msra.mxu0 0.0
    %387 = vmatprep.subr.mxu0 0.0
    %388 = vmatpush1.msra.mxu0 0.0
    %389 = vmatprep.subr.mxu0 0.0
    %390 = vmatpush1.msra.mxu0 0.0
    %391 = vmatprep.subr.mxu0 0.0
    %392 = vmatpush1.msra.mxu0 0.0
    %393 = vmatprep.subr.mxu0 0.0
    %394 = vmatpush1.msra.mxu0 0.0
    %395 = vmatprep.subr.mxu0 0.0
    %396 = vmatpush1.msra.mxu0 0.0
    %397 = vmatprep.subr.mxu0 0.0
    %398 = vmatpush1.msra.mxu0 0.0
    %399 = vmatprep.subr.mxu0 0.0
    %400 = vmatpush1.msra.mxu0 0.0
    %401 = vmatprep.subr.mxu0 0.0
    %402 = vmatpush1.msra.mxu0 0.0
    %403 = vmatprep.subr.mxu0 0.0
    %404 = vmatpush1.msra.mxu0 0.0
    %405 = vmatprep.subr.mxu0 0.0
    %406 = vmatpush1.msra.mxu0 0.0
    %407 = vmatprep.subr.mxu0 0.0
    %408 = vmatpush1.msra.mxu0 0.0
    %409 = vmatprep.subr.mxu0 0.0
    %410 = vmatpush1.msra.mxu0 0.0
    %411 = vmatprep.subr.mxu0 0.0
    %412 = vmatpush1.msra.mxu0 0.0
    %413 = vmatprep.subr.mxu0 0.0
    %414 = vmatpush1.msra.mxu0 0.0
    %415 = vmatprep.mubr.f32.mxu0 0.0
    %416 = vmatmul.mubr.f32.gmra.mrb[0].mxu0 %v271
    %v417 = vpop.f32.mrb[0].mxu0
    %v418 = vadd.f32 0.0, %v417
    %v419 = vpop.f32.mrb[0].mxu0
    %420 = vmatprep.mubr.f32.mxu0 0.0
    %421 = vmatmul.mubr.f32.gmra.mrb[0].mxu0 %v274
    %v422 = vpop.f32.mrb[0].mxu0
    %v423 = vadd.f32 0.0, %v422
    %v424 = vpop.f32.mrb[0].mxu0
    %425 = vdwg.mxu0
    %426 = vmatprep.subr.mxu0 0.0
    %427 = vmatpush1.msra.mxu0 %v212
    %428 = vmatprep.subr.mxu0 0.0
    %429 = vmatpush1.msra.mxu0 %v217
    %430 = vmatprep.subr.mxu0 0.0
    %431 = vmatpush1.msra.mxu0 0.0
    %432 = vmatprep.subr.mxu0 0.0
    %433 = vmatpush1.msra.mxu0 0.0
    %434 = vmatprep.subr.mxu0 0.0
    %435 = vmatpush1.msra.mxu0 0.0
    %436 = vmatprep.subr.mxu0 0.0
    %437 = vmatpush1.msra.mxu0 0.0
    %438 = vmatprep.subr.mxu0 0.0
    %439 = vmatpush1.msra.mxu0 0.0
    %440 = vmatprep.subr.mxu0 0.0
    %441 = vmatpush1.msra.mxu0 0.0
    %442 = vmatprep.subr.mxu0 0.0
    %443 = vmatpush1.msra.mxu0 0.0
    %444 = vmatprep.subr.mxu0 0.0
    %445 = vmatpush1.msra.mxu0 0.0
    %446 = vmatprep.subr.mxu0 0.0
    %447 = vmatpush1.msra.mxu0 0.0
    %448 = vmatprep.subr.mxu0 0.0
    %449 = vmatpush1.msra.mxu0 0.0
    %450 = vmatprep.subr.mxu0 0.0
    %451 = vmatpush1.msra.mxu0 0.0
    %452 = vmatprep.subr.mxu0 0.0
    %453 = vmatpush1.msra.mxu0 0.0
    %454 = vmatprep.subr.mxu0 0.0
    %455 = vmatpush1.msra.mxu0 0.0
    %456 = vmatprep.subr.mxu0 0.0
    %457 = vmatpush1.msra.mxu0 0.0
    %458 = vmatprep.subr.mxu0 0.0
    %459 = vmatpush1.msra.mxu0 0.0
    %460 = vmatprep.subr.mxu0 0.0
    %461 = vmatpush1.msra.mxu0 0.0
    %462 = vmatprep.subr.mxu0 0.0
    %463 = vmatpush1.msra.mxu0 0.0
    %464 = vmatprep.subr.mxu0 0.0
    %465 = vmatpush1.msra.mxu0 0.0
    %466 = vmatprep.subr.mxu0 0.0
    %467 = vmatpush1.msra.mxu0 0.0
    %468 = vmatprep.subr.mxu0 0.0
    %469 = vmatpush1.msra.mxu0 0.0
    %470 = vmatprep.subr.mxu0 0.0
    %471 = vmatpush1.msra.mxu0 0.0
    %472 = vmatprep.subr.mxu0 0.0
    %473 = vmatpush1.msra.mxu0 0.0
    %474 = vmatprep.subr.mxu0 0.0
    %475 = vmatpush1.msra.mxu0 0.0
    %476 = vmatprep.subr.mxu0 0.0
    %477 = vmatpush1.msra.mxu0 0.0
    %478 = vmatprep.subr.mxu0 0.0
    %479 = vmatpush1.msra.mxu0 0.0
    %480 = vmatprep.subr.mxu0 0.0
    %481 = vmatpush1.msra.mxu0 0.0
    %482 = vmatprep.subr.mxu0 0.0
    %483 = vmatpush1.msra.mxu0 0.0
    %484 = vmatprep.subr.mxu0 0.0
    %485 = vmatpush1.msra.mxu0 0.0
    %486 = vmatprep.subr.mxu0 0.0
    %487 = vmatpush1.msra.mxu0 0.0
    %488 = vmatprep.subr.mxu0 0.0
    %489 = vmatpush1.msra.mxu0 0.0
    %490 = vmatprep.mubr.f32.mxu0 0.0
    %491 = vmatmul.mubr.f32.gmra.mrb[0].mxu0 %v271
    %v492 = vpop.f32.mrb[0].mxu0
    %v493 = vadd.f32 0.0, %v492
    %v494 = vpop.f32.mrb[0].mxu0
    %495 = vmatprep.mubr.f32.mxu0 0.0
    %496 = vmatmul.mubr.f32.gmra.mrb[0].mxu0 %v274
    %v497 = vpop.f32.mrb[0].mxu0
    %v498 = vadd.f32 0.0, %v497
    %v499 = vpop.f32.mrb[0].mxu0
    %500 = vdwg.mxu0
    %501 = vmatprep.subr.mxu0 0.0
    %502 = vmatpush1.msra.mxu0 %v222
    %503 = vmatprep.subr.mxu0 0.0
    %504 = vmatpush1.msra.mxu0 %v227
    %505 = vmatprep.subr.mxu0 0.0
    %506 = vmatpush1.msra.mxu0 0.0
    %507 = vmatprep.subr.mxu0 0.0
    %508 = vmatpush1.msra.mxu0 0.0
    %509 = vmatprep.subr.mxu0 0.0
    %510 = vmatpush1.msra.mxu0 0.0
    %511 = vmatprep.subr.mxu0 0.0
    %512 = vmatpush1.msra.mxu0 0.0
    %513 = vmatprep.subr.mxu0 0.0
    %514 = vmatpush1.msra.mxu0 0.0
    %515 = vmatprep.subr.mxu0 0.0
    %516 = vmatpush1.msra.mxu0 0.0
    %517 = vmatprep.subr.mxu0 0.0
    %518 = vmatpush1.msra.mxu0 0.0
    %519 = vmatprep.subr.mxu0 0.0
    %520 = vmatpush1.msra.mxu0 0.0
    %521 = vmatprep.subr.mxu0 0.0
    %522 = vmatpush1.msra.mxu0 0.0
    %523 = vmatprep.subr.mxu0 0.0
    %524 = vmatpush1.msra.mxu0 0.0
    %525 = vmatprep.subr.mxu0 0.0
    %526 = vmatpush1.msra.mxu0 0.0
    %527 = vmatprep.subr.mxu0 0.0
    %528 = vmatpush1.msra.mxu0 0.0
    %529 = vmatprep.subr.mxu0 0.0
    %530 = vmatpush1.msra.mxu0 0.0
    %531 = vmatprep.subr.mxu0 0.0
    %532 = vmatpush1.msra.mxu0 0.0
    %533 = vmatprep.subr.mxu0 0.0
    %534 = vmatpush1.msra.mxu0 0.0
    %535 = vmatprep.subr.mxu0 0.0
    %536 = vmatpush1.msra.mxu0 0.0
    %537 = vmatprep.subr.mxu0 0.0
    %538 = vmatpush1.msra.mxu0 0.0
    %539 = vmatprep.subr.mxu0 0.0
    %540 = vmatpush1.msra.mxu0 0.0
    %541 = vmatprep.subr.mxu0 0.0
    %542 = vmatpush1.msra.mxu0 0.0
    %543 = vmatprep.subr.mxu0 0.0
    %544 = vmatpush1.msra.mxu0 0.0
    %545 = vmatprep.subr.mxu0 0.0
    %546 = vmatpush1.msra.mxu0 0.0
    %547 = vmatprep.subr.mxu0 0.0
    %548 = vmatpush1.msra.mxu0 0.0
    %549 = vmatprep.subr.mxu0 0.0
    %550 = vmatpush1.msra.mxu0 0.0
    %551 = vmatprep.subr.mxu0 0.0
    %552 = vmatpush1.msra.mxu0 0.0
    %553 = vmatprep.subr.mxu0 0.0
    %554 = vmatpush1.msra.mxu0 0.0
    %555 = vmatprep.subr.mxu0 0.0
    %556 = vmatpush1.msra.mxu0 0.0
    %557 = vmatprep.subr.mxu0 0.0
    %558 = vmatpush1.msra.mxu0 0.0
    %559 = vmatprep.subr.mxu0 0.0
    %560 = vmatpush1.msra.mxu0 0.0
    %561 = vmatprep.subr.mxu0 0.0
    %562 = vmatpush1.msra.mxu0 0.0
    %563 = vmatprep.subr.mxu0 0.0
    %564 = vmatpush1.msra.mxu0 0.0
    %565 = vmatprep.mubr.f32.mxu0 0.0
    %566 = vmatmul.mubr.f32.gmra.mrb[0].mxu0 %v271
    %v567 = vpop.f32.mrb[0].mxu0
    %v568 = vadd.f32 0.0, %v567
    %v569 = vpop.f32.mrb[0].mxu0
    %570 = vmatprep.mubr.f32.mxu0 0.0
    %571 = vmatmul.mubr.f32.gmra.mrb[0].mxu0 %v274
    %v572 = vpop.f32.mrb[0].mxu0
    %v573 = vadd.f32 0.0, %v572
    %v574 = vpop.f32.mrb[0].mxu0
    %575 = vdwg.mxu0
    %576 = vmatprep.subr.mxu0 0.0
    %577 = vmatpush1.msra.mxu0 %v232
    %578 = vmatprep.subr.mxu0 0.0
    %579 = vmatpush1.msra.mxu0 %v237
    %580 = vmatprep.subr.mxu0 0.0
    %581 = vmatpush1.msra.mxu0 0.0
    %582 = vmatprep.subr.mxu0 0.0
    %583 = vmatpush1.msra.mxu0 0.0
    %584 = vmatprep.subr.mxu0 0.0
    %585 = vmatpush1.msra.mxu0 0.0
    %586 = vmatprep.subr.mxu0 0.0
    %587 = vmatpush1.msra.mxu0 0.0
    %588 = vmatprep.subr.mxu0 0.0
    %589 = vmatpush1.msra.mxu0 0.0
    %590 = vmatprep.subr.mxu0 0.0
    %591 = vmatpush1.msra.mxu0 0.0
    %592 = vmatprep.subr.mxu0 0.0
    %593 = vmatpush1.msra.mxu0 0.0
    %594 = vmatprep.subr.mxu0 0.0
    %595 = vmatpush1.msra.mxu0 0.0
    %596 = vmatprep.subr.mxu0 0.0
    %597 = vmatpush1.msra.mxu0 0.0
    %598 = vmatprep.subr.mxu0 0.0
    %599 = vmatpush1.msra.mxu0 0.0
    %600 = vmatprep.subr.mxu0 0.0
    %601 = vmatpush1.msra.mxu0 0.0
    %602 = vmatprep.subr.mxu0 0.0
    %603 = vmatpush1.msra.mxu0 0.0
    %604 = vmatprep.subr.mxu0 0.0
    %605 = vmatpush1.msra.mxu0 0.0
    %606 = vmatprep.subr.mxu0 0.0
    %607 = vmatpush1.msra.mxu0 0.0
    %608 = vmatprep.subr.mxu0 0.0
    %609 = vmatpush1.msra.mxu0 0.0
    %610 = vmatprep.subr.mxu0 0.0
    %611 = vmatpush1.msra.mxu0 0.0
    %612 = vmatprep.subr.mxu0 0.0
    %613 = vmatpush1.msra.mxu0 0.0
    %614 = vmatprep.subr.mxu0 0.0
    %615 = vmatpush1.msra.mxu0 0.0
    %616 = vmatprep.subr.mxu0 0.0
    %617 = vmatpush1.msra.mxu0 0.0
    %618 = vmatprep.subr.mxu0 0.0
    %619 = vmatpush1.msra.mxu0 0.0
    %620 = vmatprep.subr.mxu0 0.0
    %621 = vmatpush1.msra.mxu0 0.0
    %622 = vmatprep.subr.mxu0 0.0
    %623 = vmatpush1.msra.mxu0 0.0
    %624 = vmatprep.subr.mxu0 0.0
    %625 = vmatpush1.msra.mxu0 0.0
    %626 = vmatprep.subr.mxu0 0.0
    %627 = vmatpush1.msra.mxu0 0.0
    %628 = vmatprep.subr.mxu0 0.0
    %629 = vmatpush1.msra.mxu0 0.0
    %630 = vmatprep.subr.mxu0 0.0
    %631 = vmatpush1.msra.mxu0 0.0
    %632 = vmatprep.subr.mxu0 0.0
    %633 = vmatpush1.msra.mxu0 0.0
    %634 = vmatprep.subr.mxu0 0.0
    %635 = vmatpush1.msra.mxu0 0.0
    %636 = vmatprep.subr.mxu0 0.0
    %637 = vmatpush1.msra.mxu0 0.0
    %638 = vmatprep.subr.mxu0 0.0
    %639 = vmatpush1.msra.mxu0 0.0
    %640 = vmatprep.mubr.f32.mxu0 0.0
    %641 = vmatmul.mubr.f32.gmra.mrb[0].mxu0 %v271
    %v642 = vpop.f32.mrb[0].mxu0
    %v643 = vadd.f32 0.0, %v642
    %v644 = vpop.f32.mrb[0].mxu0
    %645 = vmatprep.mubr.f32.mxu0 0.0
    %646 = vmatmul.mubr.f32.gmra.mrb[0].mxu0 %v274
    %v647 = vpop.f32.mrb[0].mxu0
    %v648 = vadd.f32 0.0, %v647
    %v649 = vpop.f32.mrb[0].mxu0
    %650 = vdwg.mxu0
    %651 = vmatprep.subr.mxu0 0.0
    %652 = vmatpush1.msra.mxu0 %v242
    %653 = vmatprep.subr.mxu0 0.0
    %654 = vmatpush1.msra.mxu0 %v247
    %655 = vmatprep.subr.mxu0 0.0
    %656 = vmatpush1.msra.mxu0 0.0
    %657 = vmatprep.subr.mxu0 0.0
    %658 = vmatpush1.msra.mxu0 0.0
    %659 = vmatprep.subr.mxu0 0.0
    %660 = vmatpush1.msra.mxu0 0.0
    %661 = vmatprep.subr.mxu0 0.0
    %662 = vmatpush1.msra.mxu0 0.0
    %663 = vmatprep.subr.mxu0 0.0
    %664 = vmatpush1.msra.mxu0 0.0
    %665 = vmatprep.subr.mxu0 0.0
    %666 = vmatpush1.msra.mxu0 0.0
    %667 = vmatprep.subr.mxu0 0.0
    %668 = vmatpush1.msra.mxu0 0.0
    %669 = vmatprep.subr.mxu0 0.0
    %670 = vmatpush1.msra.mxu0 0.0
    %671 = vmatprep.subr.mxu0 0.0
    %672 = vmatpush1.msra.mxu0 0.0
    %673 = vmatprep.subr.mxu0 0.0
    %674 = vmatpush1.msra.mxu0 0.0
    %675 = vmatprep.subr.mxu0 0.0
    %676 = vmatpush1.msra.mxu0 0.0
    %677 = vmatprep.subr.mxu0 0.0
    %678 = vmatpush1.msra.mxu0 0.0
    %679 = vmatprep.subr.mxu0 0.0
    %680 = vmatpush1.msra.mxu0 0.0
    %681 = vmatprep.subr.mxu0 0.0
    %682 = vmatpush1.msra.mxu0 0.0
    %683 = vmatprep.subr.mxu0 0.0
    %684 = vmatpush1.msra.mxu0 0.0
    %685 = vmatprep.subr.mxu0 0.0
    %686 = vmatpush1.msra.mxu0 0.0
    %687 = vmatprep.subr.mxu0 0.0
    %688 = vmatpush1.msra.mxu0 0.0
    %689 = vmatprep.subr.mxu0 0.0
    %690 = vmatpush1.msra.mxu0 0.0
    %691 = vmatprep.subr.mxu0 0.0
    %692 = vmatpush1.msra.mxu0 0.0
    %693 = vmatprep.subr.mxu0 0.0
    %694 = vmatpush1.msra.mxu0 0.0
    %695 = vmatprep.subr.mxu0 0.0
    %696 = vmatpush1.msra.mxu0 0.0
    %697 = vmatprep.subr.mxu0 0.0
    %698 = vmatpush1.msra.mxu0 0.0
    %699 = vmatprep.subr.mxu0 0.0
    %700 = vmatpush1.msra.mxu0 0.0
    %701 = vmatprep.subr.mxu0 0.0
    %702 = vmatpush1.msra.mxu0 0.0
    %703 = vmatprep.subr.mxu0 0.0
    %704 = vmatpush1.msra.mxu0 0.0
    %705 = vmatprep.subr.mxu0 0.0
    %706 = vmatpush1.msra.mxu0 0.0
    %707 = vmatprep.subr.mxu0 0.0
    %708 = vmatpush1.msra.mxu0 0.0
    %709 = vmatprep.subr.mxu0 0.0
    %710 = vmatpush1.msra.mxu0 0.0
    %711 = vmatprep.subr.mxu0 0.0
    %712 = vmatpush1.msra.mxu0 0.0
    %713 = vmatprep.subr.mxu0 0.0
    %714 = vmatpush1.msra.mxu0 0.0
    %715 = vmatprep.mubr.f32.mxu0 0.0
    %716 = vmatmul.mubr.f32.gmra.mrb[0].mxu0 %v271
    %v717 = vpop.f32.mrb[0].mxu0
    %v718 = vadd.f32 0.0, %v717
    %v719 = vpop.f32.mrb[0].mxu0
    %720 = vmatprep.mubr.f32.mxu0 0.0
    %721 = vmatmul.mubr.f32.gmra.mrb[0].mxu0 %v274
    %v722 = vpop.f32.mrb[0].mxu0
    %v723 = vadd.f32 0.0, %v722
    %v724 = vpop.f32.mrb[0].mxu0
    %725 = vdwg.mxu0
    %726 = vmatprep.subr.mxu0 0.0
    %727 = vmatpush1.msra.mxu0 %v252
    %728 = vmatprep.subr.mxu0 0.0
    %729 = vmatpush1.msra.mxu0 %v257
    %730 = vmatprep.subr.mxu0 0.0
    %731 = vmatpush1.msra.mxu0 0.0
    %732 = vmatprep.subr.mxu0 0.0
    %733 = vmatpush1.msra.mxu0 0.0
    %734 = vmatprep.subr.mxu0 0.0
    %735 = vmatpush1.msra.mxu0 0.0
    %736 = vmatprep.subr.mxu0 0.0
    %737 = vmatpush1.msra.mxu0 0.0
    %738 = vmatprep.subr.mxu0 0.0
    %739 = vmatpush1.msra.mxu0 0.0
    %740 = vmatprep.subr.mxu0 0.0
    %741 = vmatpush1.msra.mxu0 0.0
    %742 = vmatprep.subr.mxu0 0.0
    %743 = vmatpush1.msra.mxu0 0.0
    %744 = vmatprep.subr.mxu0 0.0
    %745 = vmatpush1.msra.mxu0 0.0
    %746 = vmatprep.subr.mxu0 0.0
    %747 = vmatpush1.msra.mxu0 0.0
    %748 = vmatprep.subr.mxu0 0.0
    %749 = vmatpush1.msra.mxu0 0.0
    %750 = vmatprep.subr.mxu0 0.0
    %751 = vmatpush1.msra.mxu0 0.0
    %752 = vmatprep.subr.mxu0 0.0
    %753 = vmatpush1.msra.mxu0 0.0
    %754 = vmatprep.subr.mxu0 0.0
    %755 = vmatpush1.msra.mxu0 0.0
    %756 = vmatprep.subr.mxu0 0.0
    %757 = vmatpush1.msra.mxu0 0.0
    %758 = vmatprep.subr.mxu0 0.0
    %759 = vmatpush1.msra.mxu0 0.0
    %760 = vmatprep.subr.mxu0 0.0
    %761 = vmatpush1.msra.mxu0 0.0
    %762 = vmatprep.subr.mxu0 0.0
    %763 = vmatpush1.msra.mxu0 0.0
    %764 = vmatprep.subr.mxu0 0.0
    %765 = vmatpush1.msra.mxu0 0.0
    %766 = vmatprep.subr.mxu0 0.0
    %767 = vmatpush1.msra.mxu0 0.0
    %768 = vmatprep.subr.mxu0 0.0
    %769 = vmatpush1.msra.mxu0 0.0
    %770 = vmatprep.subr.mxu0 0.0
    %771 = vmatpush1.msra.mxu0 0.0
    %772 = vmatprep.subr.mxu0 0.0
    %773 = vmatpush1.msra.mxu0 0.0
    %774 = vmatprep.subr.mxu0 0.0
    %775 = vmatpush1.msra.mxu0 0.0
    %776 = vmatprep.subr.mxu0 0.0
    %777 = vmatpush1.msra.mxu0 0.0
    %778 = vmatprep.subr.mxu0 0.0
    %779 = vmatpush1.msra.mxu0 0.0
    %780 = vmatprep.subr.mxu0 0.0
    %781 = vmatpush1.msra.mxu0 0.0
    %782 = vmatprep.subr.mxu0 0.0
    %783 = vmatpush1.msra.mxu0 0.0
    %784 = vmatprep.subr.mxu0 0.0
    %785 = vmatpush1.msra.mxu0 0.0
    %786 = vmatprep.subr.mxu0 0.0
    %787 = vmatpush1.msra.mxu0 0.0
    %788 = vmatprep.subr.mxu0 0.0
    %789 = vmatpush1.msra.mxu0 0.0
    %790 = vmatprep.mubr.f32.mxu0 0.0
    %791 = vmatmul.mubr.f32.gmra.mrb[0].mxu0 %v271
    %v792 = vpop.f32.mrb[0].mxu0
    %v793 = vadd.f32 0.0, %v792
    %v794 = vpop.f32.mrb[0].mxu0
    %795 = vmatprep.mubr.f32.mxu0 0.0
    %796 = vmatmul.mubr.f32.gmra.mrb[0].mxu0 %v274
    %v797 = vpop.f32.mrb[0].mxu0
    %v798 = vadd.f32 0.0, %v797
    %v799 = vpop.f32.mrb[0].mxu0
    %800 = vdwg.mxu0
    %801 = vmatprep.subr.mxu0 0.0
    %802 = vmatpush1.msra.mxu0 %v262
    %803 = vmatprep.subr.mxu0 0.0
    %804 = vmatpush1.msra.mxu0 %v267
    %805 = vmatprep.subr.mxu0 0.0
    %806 = vmatpush1.msra.mxu0 0.0
    %807 = vmatprep.subr.mxu0 0.0
    %808 = vmatpush1.msra.mxu0 0.0
    %809 = vmatprep.subr.mxu0 0.0
    %810 = vmatpush1.msra.mxu0 0.0
    %811 = vmatprep.subr.mxu0 0.0
    %812 = vmatpush1.msra.mxu0 0.0
    %813 = vmatprep.subr.mxu0 0.0
    %814 = vmatpush1.msra.mxu0 0.0
    %815 = vmatprep.subr.mxu0 0.0
    %816 = vmatpush1.msra.mxu0 0.0
    %817 = vmatprep.subr.mxu0 0.0
    %818 = vmatpush1.msra.mxu0 0.0
    %819 = vmatprep.subr.mxu0 0.0
    %820 = vmatpush1.msra.mxu0 0.0
    %821 = vmatprep.subr.mxu0 0.0
    %822 = vmatpush1.msra.mxu0 0.0
    %823 = vmatprep.subr.mxu0 0.0
    %824 = vmatpush1.msra.mxu0 0.0
    %825 = vmatprep.subr.mxu0 0.0
    %826 = vmatpush1.msra.mxu0 0.0
    %827 = vmatprep.subr.mxu0 0.0
    %828 = vmatpush1.msra.mxu0 0.0
    %829 = vmatprep.subr.mxu0 0.0
    %830 = vmatpush1.msra.mxu0 0.0
    %831 = vmatprep.subr.mxu0 0.0
    %832 = vmatpush1.msra.mxu0 0.0
    %833 = vmatprep.subr.mxu0 0.0
    %834 = vmatpush1.msra.mxu0 0.0
    %835 = vmatprep.subr.mxu0 0.0
    %836 = vmatpush1.msra.mxu0 0.0
    %837 = vmatprep.subr.mxu0 0.0
    %838 = vmatpush1.msra.mxu0 0.0
    %839 = vmatprep.subr.mxu0 0.0
    %840 = vmatpush1.msra.mxu0 0.0
    %841 = vmatprep.subr.mxu0 0.0
    %842 = vmatpush1.msra.mxu0 0.0
    %843 = vmatprep.subr.mxu0 0.0
    %844 = vmatpush1.msra.mxu0 0.0
    %845 = vmatprep.subr.mxu0 0.0
    %846 = vmatpush1.msra.mxu0 0.0
    %847 = vmatprep.subr.mxu0 0.0
    %848 = vmatpush1.msra.mxu0 0.0
    %849 = vmatprep.subr.mxu0 0.0
    %850 = vmatpush1.msra.mxu0 0.0
    %851 = vmatprep.subr.mxu0 0.0
    %852 = vmatpush1.msra.mxu0 0.0
    %853 = vmatprep.subr.mxu0 0.0
    %854 = vmatpush1.msra.mxu0 0.0
    %855 = vmatprep.subr.mxu0 0.0
    %856 = vmatpush1.msra.mxu0 0.0
    %857 = vmatprep.subr.mxu0 0.0
    %858 = vmatpush1.msra.mxu0 0.0
    %859 = vmatprep.subr.mxu0 0.0
    %860 = vmatpush1.msra.mxu0 0.0
    %861 = vmatprep.subr.mxu0 0.0
    %862 = vmatpush1.msra.mxu0 0.0
    %863 = vmatprep.subr.mxu0 0.0
    %864 = vmatpush1.msra.mxu0 0.0
    %865 = vmatprep.mubr.f32.mxu0 0.0
    %866 = vmatmul.mubr.f32.gmra.mrb[0].mxu0 %v271
    %v867 = vpop.f32.mrb[0].mxu0
    %v868 = vadd.f32 0.0, %v867
    %v869 = vpop.f32.mrb[0].mxu0
    %870 = vmatprep.mubr.f32.mxu0 0.0
    %871 = vmatmul.mubr.f32.gmra.mrb[0].mxu0 %v274
    %v872 = vpop.f32.mrb[0].mxu0
    %v873 = vadd.f32 0.0, %v872
    %v874 = vpop.f32.mrb[0].mxu0
    %875 = vdwg.mxu0
    %v876 = vmul.f32 %v343, 0.04
    %v877 = vmul.f32 %v348, 0.04
    %v878 = vmul.f32 %v418, 0.04
    %v879 = vmul.f32 %v423, 0.04
    %v880 = vmul.f32 %v493, 0.04
    %v881 = vmul.f32 %v498, 0.04
    %v882 = vmul.f32 %v568, 0.04
    %v883 = vmul.f32 %v573, 0.04
    %v884 = vmul.f32 %v643, 0.04
    %v885 = vmul.f32 %v648, 0.04
    %v886 = vmul.f32 %v718, 0.04
    %v887 = vmul.f32 %v723, 0.04
    %v888 = vmul.f32 %v793, 0.04
    %v889 = vmul.f32 %v798, 0.04
    %v890 = vmul.f32 %v868, 0.04
    %v891 = vmul.f32 %v873, 0.04
    %892 = vst.msk [vmem:[#allocation8] sm:$0xff] %vm76, %v876
    %893 = vst.msk [vmem:[#allocation8 + $0x8] sm:$0xff] %vm76, %v877
    %894 = vst.msk [vmem:[#allocation8 + $0x10] sm:$0xff] %vm76, %v878
    %895 = vst.msk [vmem:[#allocation8 + $0x18] sm:$0xff] %vm76, %v879
    %896 = vst.msk [vmem:[#allocation8 + $0x20] sm:$0xff] %vm76, %v880
    %897 = vst.msk [vmem:[#allocation8 + $0x28] sm:$0xff] %vm76, %v881
    %898 = vst.msk [vmem:[#allocation8 + $0x30] sm:$0xff] %vm76, %v882
    %899 = vst.msk [vmem:[#allocation8 + $0x38] sm:$0xff] %vm76, %v883
    %900 = vst.msk [vmem:[#allocation8 + $0x40] sm:$0xff] %vm76, %v884
    %901 = vst.msk [vmem:[#allocation8 + $0x48] sm:$0xff] %vm76, %v885
    %902 = vst.msk [vmem:[#allocation8 + $0x50] sm:$0xff] %vm76, %v886
    %903 = vst.msk [vmem:[#allocation8 + $0x58] sm:$0xff] %vm76, %v887
    %904 = vst.msk [vmem:[#allocation8 + $0x60] sm:$0xff] %vm76, %v888
    %905 = vst.msk [vmem:[#allocation8 + $0x68] sm:$0xff] %vm76, %v889
    %906 = vst.msk [vmem:[#allocation8 + $0x70] sm:$0xff] %vm76, %v890
    %907 = vst.msk [vmem:[#allocation8 + $0x78] sm:$0xff] %vm76, %v891
    // Predicated region
    $region26: #{tpu_custom_call.1} parent=1 // pred_check
      _
    $region27: #{tpu_custom_call.1} parent=1 // pred_check_branch
      %909 = sbr.rel (0) target = $region29
    $region28: #{tpu_custom_call.1} parent=1 // pred_region
      %s911 = ssub.s32 2048, 2048
      %912 = vsyncadd [#allocation4], %s911
      %s913 = sshll.u32 [#allocation8], 4
      %s914 = int_to_ptr.vmem [resolvable:$true] %s913
      %919 = dma.vmem_to_hbm [thread:$0]  %s914, 2048, %s3, [#allocation4], 128, 128, 8
    $region29: #{tpu_custom_call.1} parent=1 // pred_fallthru
      _
    // Predicated region
    $region30: #{tpu_custom_call.1} parent=1 // pred_check
      _
    $region31: #{tpu_custom_call.1} parent=1 // pred_check_branch
      %921 = sbr.rel (0) target = $region33
    $region32: #{tpu_custom_call.1} parent=1 // pred_region
      %922 = dma.done [#allocation4], 2048
    $region33: #{tpu_custom_call.1} parent=1 // pred_fallthru
      _
    %923 = vsyncpa [#allocation3], 1
    %924 = vsyncpa [#allocation6], 1
    %925 = vsyncpa [#allocation4], 1

// kernel: tpu_custom_call.1
$region0: #{tpu_custom_call.1}
  #allocation0 [shape = 'u32[]', space=smem, size = 0x4, offset = 0x4, fixed_abs, tag = 'smem constant byte address 0x4 - core index']
  #allocation1 [shape = 'u32[144,128]{1,0:T(1,128)}', space=vmem, size = 0x12000, scoped, tag = 'internal scratch']
  %s0 = inlined_call_operand.hbm [shape: f32[8,16,16], index: 0, kind: input, shape index: {}]
  %s1 = inlined_call_operand.hbm [shape: f32[16,16], index: 1, kind: input, shape index: {}]
  %s2 = inlined_call_operand.hbm [shape: f32[16,16], index: 2, kind: input, shape index: {}]
  %s3 = inlined_call_operand.hbm [shape: f32[8,16,16], index: 3, kind: output, shape index: {}]
  %s4 = sld [smem:[#allocation0]]
  $region34: #{tpu_custom_call.1} parent=0
    _
  %s6 = ssub.s32 1, %s4
  %s7 = scalar_select 0, %s6, %s4
  $region1: #{tpu_custom_call.1} parent=0
    #allocation2 [shape = 'u8[65536]{0}', space=vmem, size = 0x10000, scoped, tag = 'input window, operand 0, single buffered']
    #allocation3 [shape = 's32[1]{0}', space=sflag, size = 0x4, scoped, tag = 'scoped memory for tpu_custom_call.1']
    #allocation4 [shape = 's32[1]{0}', space=sflag, size = 0x4, scoped, tag = 'scoped memory for tpu_custom_call.1']
    #allocation5 [shape = 'u8[8192]{0}', space=vmem, size = 0x2000, scoped, tag = 'input window, operand 1, single buffered']
    #allocation6 [shape = 's32[1]{0}', space=sflag, size = 0x4, scoped, tag = 'scoped memory for tpu_custom_call.1']
    #allocation7 [shape = 'u8[8192]{0}', space=vmem, size = 0x2000, scoped, tag = 'input window, operand 2, single buffered']
    #allocation8 [shape = 'u8[65536]{0}', space=vmem, size = 0x10000, scoped, tag = 'output window, operand 0, single buffered']
    %8 = vsyncpa [#allocation3], 0
    %9 = vsyncpa [#allocation6], 0
    %10 = vsyncpa [#allocation4], 0
    // Predicated region
    $region2: #{tpu_custom_call.1} parent=1 // pred_check
      _
    $region3: #{tpu_custom_call.1} parent=1 // pred_check_branch
      %12 = sbr.rel (0) target = $region5
    $region4: #{tpu_custom_call.1} parent=1 // pred_region
      %s14 = ssub.s32 2048, 2048
      %15 = vsyncadd [#allocation3], %s14
      %s16 = sshll.u32 [#allocation2], 4
      %s17 = int_to_ptr.vmem [resolvable:$true] %s16
      %22 = dma.hbm_to_vmem [thread:$0]  %s0, 2048, %s17, [#allocation3], 128, 128, 8
    $region5: #{tpu_custom_call.1} parent=1 // pred_fallthru
      _
    // Predicated region
    $region6: #{tpu_custom_call.1} parent=1 // pred_check
      _
    $region7: #{tpu_custom_call.1} parent=1 // pred_check_branch
      %24 = sbr.rel (0) target = $region9
    $region8: #{tpu_custom_call.1} parent=1 // pred_region
      %s26 = ssub.s32 256, 256
      %27 = vsyncadd [#allocation6], %s26
      %s28 = sshll.u32 [#allocation5], 4
      %s29 = int_to_ptr.vmem [resolvable:$true] %s28
      %34 = dma.hbm_to_vmem [thread:$0]  %s1, 256, %s29, [#allocation6], 128, 128, 8
    $region9: #{tpu_custom_call.1} parent=1 // pred_fallthru
      _
    // Predicated region
    $region10: #{tpu_custom_call.1} parent=1 // pred_check
      _
    $region11: #{tpu_custom_call.1} parent=1 // pred_check_branch
      %36 = sbr.rel (0) target = $region13
    $region12: #{tpu_custom_call.1} parent=1 // pred_region
      %s38 = ssub.s32 256, 256
      %39 = vsyncadd [#allocation6], %s38
      %s40 = sshll.u32 [#allocation7], 4
      %s41 = int_to_ptr.vmem [resolvable:$true] %s40
      %46 = dma.hbm_to_vmem [thread:$0]  %s2, 256, %s41, [#allocation6], 128, 128, 8
    $region13: #{tpu_custom_call.1} parent=1 // pred_fallthru
      _
    // Predicated region
    $region14: #{tpu_custom_call.1} parent=1 // pred_check
      _
    $region15: #{tpu_custom_call.1} parent=1 // pred_check_branch
      %48 = sbr.rel (0) target = $region17
    $region16: #{tpu_custom_call.1} parent=1 // pred_region
      %49 = dma.done [#allocation3], 2048
    $region17: #{tpu_custom_call.1} parent=1 // pred_fallthru
      _
    // Predicated region
    $region18: #{tpu_custom_call.1} parent=1 // pred_check
      _
    $region19: #{tpu_custom_call.1} parent=1 // pred_check_branch
      %51 = sbr.rel (0) target = $region21
    $region20: #{tpu_custom_call.1} parent=1 // pred_region
      %52 = dma.done [#allocation6], 256
    $region21: #{tpu_custom_call.1} parent=1 // pred_fallthru
      _
    // Predicated region
    $region22: #{tpu_custom_call.1} parent=1 // pred_check
      _
    $region23: #{tpu_custom_call.1} parent=1 // pred_check_branch
      %54 = sbr.rel (0) target = $region25
    $region24: #{tpu_custom_call.1} parent=1 // pred_region
      %55 = dma.done [#allocation6], 256
    $region25: #{tpu_custom_call.1} parent=1 // pred_fallthru
      _
    %v56 = vld [vmem:[#allocation5] sm:$0xff]
    %v57 = vld [vmem:[#allocation5 + $0x8] sm:$0xff]
    %v58 = vld [vmem:[#allocation7] sm:$0xff]
    %v59 = vld [vmem:[#allocation7 + $0x8] sm:$0xff]
    %v60 = vld [vmem:[#allocation2] sm:$0xff]
    %v61 = vld [vmem:[#allocation2 + $0x8] sm:$0xff]
    %v62 = vld [vmem:[#allocation2 + $0x10] sm:$0xff]
    %v63 = vld [vmem:[#allocation2 + $0x18] sm:$0xff]
    %v64 = vld [vmem:[#allocation2 + $0x20] sm:$0xff]
    %v65 = vld [vmem:[#allocation2 + $0x28] sm:$0xff]
    %v66 = vld [vmem:[#allocation2 + $0x30] sm:$0xff]
    %v67 = vld [vmem:[#allocation2 + $0x38] sm:$0xff]
    %v68 = vld [vmem:[#allocation2 + $0x40] sm:$0xff]
    %v69 = vld [vmem:[#allocation2 + $0x48] sm:$0xff]
    %v70 = vld [vmem:[#allocation2 + $0x50] sm:$0xff]
    %v71 = vld [vmem:[#allocation2 + $0x58] sm:$0xff]
    %v72 = vld [vmem:[#allocation2 + $0x60] sm:$0xff]
    %v73 = vld [vmem:[#allocation2 + $0x68] sm:$0xff]
    %v74 = vld [vmem:[#allocation2 + $0x70] sm:$0xff]
    %v75 = vld [vmem:[#allocation2 + $0x78] sm:$0xff]
    %vm76 = vcmask 130048
    %v78 = vsel %vm76, %v60, 0
    %v81 = vsel %vm76, %v61, 0
    %v84 = vsel %vm76, %v62, 0
    %v87 = vsel %vm76, %v63, 0
    %v90 = vsel %vm76, %v64, 0
    %v93 = vsel %vm76, %v65, 0
    %v96 = vsel %vm76, %v66, 0
    %v99 = vsel %vm76, %v67, 0
    %v102 = vsel %vm76, %v68, 0
    %v105 = vsel %vm76, %v69, 0
    %v108 = vsel %vm76, %v70, 0
    %v111 = vsel %vm76, %v71, 0
    %v114 = vsel %vm76, %v72, 0
    %v117 = vsel %vm76, %v73, 0
    %v120 = vsel %vm76, %v74, 0
    %v123 = vsel %vm76, %v75, 0
    %125 = vmatprep.subr.mxu0 0.0
    %126 = vmatpush1.msra.mxu0 %v58
    %127 = vmatprep.subr.mxu0 0.0
    %128 = vmatpush1.msra.mxu0 %v59
    %129 = vmatprep.subr.mxu0 0.0
    %130 = vmatpush1.msra.mxu0 0.0
    %131 = vmatprep.subr.mxu0 0.0
    %132 = vmatpush1.msra.mxu0 0.0
    %133 = vmatprep.subr.mxu0 0.0
    %134 = vmatpush1.msra.mxu0 0.0
    %135 = vmatprep.subr.mxu0 0.0
    %136 = vmatpush1.msra.mxu0 0.0
    %137 = vmatprep.subr.mxu0 0.0
    %138 = vmatpush1.msra.mxu0 0.0
    %139 = vmatprep.subr.mxu0 0.0
    %140 = vmatpush1.msra.mxu0 0.0
    %141 = vmatprep.subr.mxu0 0.0
    %142 = vmatpush1.msra.mxu0 0.0
    %143 = vmatprep.subr.mxu0 0.0
    %144 = vmatpush1.msra.mxu0 0.0
    %145 = vmatprep.subr.mxu0 0.0
    %146 = vmatpush1.msra.mxu0 0.0
    %147 = vmatprep.subr.mxu0 0.0
    %148 = vmatpush1.msra.mxu0 0.0
    %149 = vmatprep.subr.mxu0 0.0
    %150 = vmatpush1.msra.mxu0 0.0
    %151 = vmatprep.subr.mxu0 0.0
    %152 = vmatpush1.msra.mxu0 0.0
    %153 = vmatprep.subr.mxu0 0.0
    %154 = vmatpush1.msra.mxu0 0.0
    %155 = vmatprep.subr.mxu0 0.0
    %156 = vmatpush1.msra.mxu0 0.0
    %157 = vmatprep.subr.mxu0 0.0
    %158 = vmatpush1.msra.mxu0 0.0
    %159 = vmatprep.subr.mxu0 0.0
    %160 = vmatpush1.msra.mxu0 0.0
    %161 = vmatprep.subr.mxu0 0.0
    %162 = vmatpush1.msra.mxu0 0.0
    %163 = vmatprep.subr.mxu0 0.0
    %164 = vmatpush1.msra.mxu0 0.0
    %165 = vmatprep.subr.mxu0 0.0
    %166 = vmatpush1.msra.mxu0 0.0
    %167 = vmatprep.subr.mxu0 0.0
    %168 = vmatpush1.msra.mxu0 0.0
    %169 = vmatprep.subr.mxu0 0.0
    %170 = vmatpush1.msra.mxu0 0.0
    %171 = vmatprep.subr.mxu0 0.0
    %172 = vmatpush1.msra.mxu0 0.0
    %173 = vmatprep.subr.mxu0 0.0
    %174 = vmatpush1.msra.mxu0 0.0
    %175 = vmatprep.subr.mxu0 0.0
    %176 = vmatpush1.msra.mxu0 0.0
    %177 = vmatprep.subr.mxu0 0.0
    %178 = vmatpush1.msra.mxu0 0.0
    %179 = vmatprep.subr.mxu0 0.0
    %180 = vmatpush1.msra.mxu0 0.0
    %181 = vmatprep.subr.mxu0 0.0
    %182 = vmatpush1.msra.mxu0 0.0
    %183 = vmatprep.subr.mxu0 0.0
    %184 = vmatpush1.msra.mxu0 0.0
    %185 = vmatprep.subr.mxu0 0.0
    %186 = vmatpush1.msra.mxu0 0.0
    %187 = vmatprep.subr.mxu0 0.0
    %188 = vmatpush1.msra.mxu0 0.0
    %189 = vmatprep.mubr.f32.mxu0 0.0
    %190 = vmatmul.mubr.f32.gmra.mrb[0].mxu0 %v78
    %v191 = vpop.f32.mrb[0].mxu0
    %v192 = vadd.f32 0.0, %v191
    %v193 = vpop.f32.mrb[0].mxu0
    %194 = vmatprep.mubr.f32.mxu0 0.0
    %195 = vmatmul.mubr.f32.gmra.mrb[0].mxu0 %v81
    %v196 = vpop.f32.mrb[0].mxu0
    %v197 = vadd.f32 0.0, %v196
    %v198 = vpop.f32.mrb[0].mxu0
    %199 = vmatprep.mubr.f32.mxu0 0.0
    %200 = vmatmul.mubr.f32.gmra.mrb[0].mxu0 %v84
    %v201 = vpop.f32.mrb[0].mxu0
    %v202 = vadd.f32 0.0, %v201
    %v203 = vpop.f32.mrb[0].mxu0
    %204 = vmatprep.mubr.f32.mxu0 0.0
    %205 = vmatmul.mubr.f32.gmra.mrb[0].mxu0 %v87
    %v206 = vpop.f32.mrb[0].mxu0
    %v207 = vadd.f32 0.0, %v206
    %v208 = vpop.f32.mrb[0].mxu0
    %209 = vmatprep.mubr.f32.mxu0 0.0
    %210 = vmatmul.mubr.f32.gmra.mrb[0].mxu0 %v90
    %v211 = vpop.f32.mrb[0].mxu0
    %v212 = vadd.f32 0.0, %v211
    %v213 = vpop.f32.mrb[0].mxu0
    %214 = vmatprep.mubr.f32.mxu0 0.0
    %215 = vmatmul.mubr.f32.gmra.mrb[0].mxu0 %v93
    %v216 = vpop.f32.mrb[0].mxu0
    %v217 = vadd.f32 0.0, %v216
    %v218 = vpop.f32.mrb[0].mxu0
    %219 = vmatprep.mubr.f32.mxu0 0.0
    %220 = vmatmul.mubr.f32.gmra.mrb[0].mxu0 %v96
    %v221 = vpop.f32.mrb[0].mxu0
    %v222 = vadd.f32 0.0, %v221
    %v223 = vpop.f32.mrb[0].mxu0
    %224 = vmatprep.mubr.f32.mxu0 0.0
    %225 = vmatmul.mubr.f32.gmra.mrb[0].mxu0 %v99
    %v226 = vpop.f32.mrb[0].mxu0
    %v227 = vadd.f32 0.0, %v226
    %v228 = vpop.f32.mrb[0].mxu0
    %229 = vmatprep.mubr.f32.mxu0 0.0
    %230 = vmatmul.mubr.f32.gmra.mrb[0].mxu0 %v102
    %v231 = vpop.f32.mrb[0].mxu0
    %v232 = vadd.f32 0.0, %v231
    %v233 = vpop.f32.mrb[0].mxu0
    %234 = vmatprep.mubr.f32.mxu0 0.0
    %235 = vmatmul.mubr.f32.gmra.mrb[0].mxu0 %v105
    %v236 = vpop.f32.mrb[0].mxu0
    %v237 = vadd.f32 0.0, %v236
    %v238 = vpop.f32.mrb[0].mxu0
    %239 = vmatprep.mubr.f32.mxu0 0.0
    %240 = vmatmul.mubr.f32.gmra.mrb[0].mxu0 %v108
    %v241 = vpop.f32.mrb[0].mxu0
    %v242 = vadd.f32 0.0, %v241
    %v243 = vpop.f32.mrb[0].mxu0
    %244 = vmatprep.mubr.f32.mxu0 0.0
    %245 = vmatmul.mubr.f32.gmra.mrb[0].mxu0 %v111
    %v246 = vpop.f32.mrb[0].mxu0
    %v247 = vadd.f32 0.0, %v246
    %v248 = vpop.f32.mrb[0].mxu0
    %249 = vmatprep.mubr.f32.mxu0 0.0
    %250 = vmatmul.mubr.f32.gmra.mrb[0].mxu0 %v114
    %v251 = vpop.f32.mrb[0].mxu0
    %v252 = vadd.f32 0.0, %v251
    %v253 = vpop.f32.mrb[0].mxu0
    %254 = vmatprep.mubr.f32.mxu0 0.0
    %255 = vmatmul.mubr.f32.gmra.mrb[0].mxu0 %v117
    %v256 = vpop.f32.mrb[0].mxu0
    %v257 = vadd.f32 0.0, %v256
    %v258 = vpop.f32.mrb[0].mxu0
    %259 = vmatprep.mubr.f32.mxu0 0.0
    %260 = vmatmul.mubr.f32.gmra.mrb[0].mxu0 %v120
    %v261 = vpop.f32.mrb[0].mxu0
    %v262 = vadd.f32 0.0, %v261
    %v263 = vpop.f32.mrb[0].mxu0
    %264 = vmatprep.mubr.f32.mxu0 0.0
    %265 = vmatmul.mubr.f32.gmra.mrb[0].mxu0 %v123
    %v266 = vpop.f32.mrb[0].mxu0
    %v267 = vadd.f32 0.0, %v266
    %v268 = vpop.f32.mrb[0].mxu0
    %269 = vdwg.mxu0
    %v271 = vsel %vm76, %v56, 0
    %v274 = vsel %vm76, %v57, 0
    %276 = vmatprep.subr.mxu0 0.0
    %277 = vmatpush1.msra.mxu0 %v192
    %278 = vmatprep.subr.mxu0 0.0
    %279 = vmatpush1.msra.mxu0 %v197
    %280 = vmatprep.subr.mxu0 0.0
    %281 = vmatpush1.msra.mxu0 0.0
    %282 = vmatprep.subr.mxu0 0.0
    %283 = vmatpush1.msra.mxu0 0.0
    %284 = vmatprep.subr.mxu0 0.0
    %285 = vmatpush1.msra.mxu0 0.0
    %286 = vmatprep.subr.mxu0 0.0
    %287 = vmatpush1.msra.mxu0 0.0
    %288 = vmatprep.subr.mxu0 0.0
    %289 = vmatpush1.msra.mxu0 0.0
    %290 = vmatprep.subr.mxu0 0.0
    %291 = vmatpush1.msra.mxu0 0.0
    %292 = vmatprep.subr.mxu0 0.0
    %293 = vmatpush1.msra.mxu0 0.0
    %294 = vmatprep.subr.mxu0 0.0
    %295 = vmatpush1.msra.mxu0 0.0
    %296 = vmatprep.subr.mxu0 0.0
    %297 = vmatpush1.msra.mxu0 0.0
    %298 = vmatprep.subr.mxu0 0.0
    %299 = vmatpush1.msra.mxu0 0.0
    %300 = vmatprep.subr.mxu0 0.0
    %301 = vmatpush1.msra.mxu0 0.0
    %302 = vmatprep.subr.mxu0 0.0
    %303 = vmatpush1.msra.mxu0 0.0
    %304 = vmatprep.subr.mxu0 0.0
    %305 = vmatpush1.msra.mxu0 0.0
    %306 = vmatprep.subr.mxu0 0.0
    %307 = vmatpush1.msra.mxu0 0.0
    %308 = vmatprep.subr.mxu0 0.0
    %309 = vmatpush1.msra.mxu0 0.0
    %310 = vmatprep.subr.mxu0 0.0
    %311 = vmatpush1.msra.mxu0 0.0
    %312 = vmatprep.subr.mxu0 0.0
    %313 = vmatpush1.msra.mxu0 0.0
    %314 = vmatprep.subr.mxu0 0.0
    %315 = vmatpush1.msra.mxu0 0.0
    %316 = vmatprep.subr.mxu0 0.0
    %317 = vmatpush1.msra.mxu0 0.0
    %318 = vmatprep.subr.mxu0 0.0
    %319 = vmatpush1.msra.mxu0 0.0
    %320 = vmatprep.subr.mxu0 0.0
    %321 = vmatpush1.msra.mxu0 0.0
    %322 = vmatprep.subr.mxu0 0.0
    %323 = vmatpush1.msra.mxu0 0.0
    %324 = vmatprep.subr.mxu0 0.0
    %325 = vmatpush1.msra.mxu0 0.0
    %326 = vmatprep.subr.mxu0 0.0
    %327 = vmatpush1.msra.mxu0 0.0
    %328 = vmatprep.subr.mxu0 0.0
    %329 = vmatpush1.msra.mxu0 0.0
    %330 = vmatprep.subr.mxu0 0.0
    %331 = vmatpush1.msra.mxu0 0.0
    %332 = vmatprep.subr.mxu0 0.0
    %333 = vmatpush1.msra.mxu0 0.0
    %334 = vmatprep.subr.mxu0 0.0
    %335 = vmatpush1.msra.mxu0 0.0
    %336 = vmatprep.subr.mxu0 0.0
    %337 = vmatpush1.msra.mxu0 0.0
    %338 = vmatprep.subr.mxu0 0.0
    %339 = vmatpush1.msra.mxu0 0.0
    %340 = vmatprep.mubr.f32.mxu0 0.0
    %341 = vmatmul.mubr.f32.gmra.mrb[0].mxu0 %v271
    %v342 = vpop.f32.mrb[0].mxu0
    %v343 = vadd.f32 0.0, %v342
    %v344 = vpop.f32.mrb[0].mxu0
    %345 = vmatprep.mubr.f32.mxu0 0.0
    %346 = vmatmul.mubr.f32.gmra.mrb[0].mxu0 %v274
    %v347 = vpop.f32.mrb[0].mxu0
    %v348 = vadd.f32 0.0, %v347
    %v349 = vpop.f32.mrb[0].mxu0
    %350 = vdwg.mxu0
    %351 = vmatprep.subr.mxu0 0.0
    %352 = vmatpush1.msra.mxu0 %v202
    %353 = vmatprep.subr.mxu0 0.0
    %354 = vmatpush1.msra.mxu0 %v207
    %355 = vmatprep.subr.mxu0 0.0
    %356 = vmatpush1.msra.mxu0 0.0
    %357 = vmatprep.subr.mxu0 0.0
    %358 = vmatpush1.msra.mxu0 0.0
    %359 = vmatprep.subr.mxu0 0.0
    %360 = vmatpush1.msra.mxu0 0.0
    %361 = vmatprep.subr.mxu0 0.0
    %362 = vmatpush1.msra.mxu0 0.0
    %363 = vmatprep.subr.mxu0 0.0
    %364 = vmatpush1.msra.mxu0 0.0
    %365 = vmatprep.subr.mxu0 0.0
    %366 = vmatpush1.msra.mxu0 0.0
    %367 = vmatprep.subr.mxu0 0.0
    %368 = vmatpush1.msra.mxu0 0.0
    %369 = vmatprep.subr.mxu0 0.0
    %370 = vmatpush1.msra.mxu0 0.0
    %371 = vmatprep.subr.mxu0 0.0
    %372 = vmatpush1.msra.mxu0 0.0
    %373 = vmatprep.subr.mxu0 0.0
    %374 = vmatpush1.msra.mxu0 0.0
    %375 = vmatprep.subr.mxu0 0.0
    %376 = vmatpush1.msra.mxu0 0.0
    %377 = vmatprep.subr.mxu0 0.0
    %378 = vmatpush1.msra.mxu0 0.0
    %379 = vmatprep.subr.mxu0 0.0
    %380 = vmatpush1.msra.mxu0 0.0
    %381 = vmatprep.subr.mxu0 0.0
    %382 = vmatpush1.msra.mxu0 0.0
    %383 = vmatprep.subr.mxu0 0.0
    %384 = vmatpush1.msra.mxu0 0.0
    %385 = vmatprep.subr.mxu0 0.0
    %386 = vmatpush1.msra.mxu0 0.0
    %387 = vmatprep.subr.mxu0 0.0
    %388 = vmatpush1.msra.mxu0 0.0
    %389 = vmatprep.subr.mxu0 0.0
    %390 = vmatpush1.msra.mxu0 0.0
    %391 = vmatprep.subr.mxu0 0.0
    %392 = vmatpush1.msra.mxu0 0.0
    %393 = vmatprep.subr.mxu0 0.0
    %394 = vmatpush1.msra.mxu0 0.0
    %395 = vmatprep.subr.mxu0 0.0
    %396 = vmatpush1.msra.mxu0 0.0
    %397 = vmatprep.subr.mxu0 0.0
    %398 = vmatpush1.msra.mxu0 0.0
    %399 = vmatprep.subr.mxu0 0.0
    %400 = vmatpush1.msra.mxu0 0.0
    %401 = vmatprep.subr.mxu0 0.0
    %402 = vmatpush1.msra.mxu0 0.0
    %403 = vmatprep.subr.mxu0 0.0
    %404 = vmatpush1.msra.mxu0 0.0
    %405 = vmatprep.subr.mxu0 0.0
    %406 = vmatpush1.msra.mxu0 0.0
    %407 = vmatprep.subr.mxu0 0.0
    %408 = vmatpush1.msra.mxu0 0.0
    %409 = vmatprep.subr.mxu0 0.0
    %410 = vmatpush1.msra.mxu0 0.0
    %411 = vmatprep.subr.mxu0 0.0
    %412 = vmatpush1.msra.mxu0 0.0
    %413 = vmatprep.subr.mxu0 0.0
    %414 = vmatpush1.msra.mxu0 0.0
    %415 = vmatprep.mubr.f32.mxu0 0.0
    %416 = vmatmul.mubr.f32.gmra.mrb[0].mxu0 %v271
    %v417 = vpop.f32.mrb[0].mxu0
    %v418 = vadd.f32 0.0, %v417
    %v419 = vpop.f32.mrb[0].mxu0
    %420 = vmatprep.mubr.f32.mxu0 0.0
    %421 = vmatmul.mubr.f32.gmra.mrb[0].mxu0 %v274
    %v422 = vpop.f32.mrb[0].mxu0
    %v423 = vadd.f32 0.0, %v422
    %v424 = vpop.f32.mrb[0].mxu0
    %425 = vdwg.mxu0
    %426 = vmatprep.subr.mxu0 0.0
    %427 = vmatpush1.msra.mxu0 %v212
    %428 = vmatprep.subr.mxu0 0.0
    %429 = vmatpush1.msra.mxu0 %v217
    %430 = vmatprep.subr.mxu0 0.0
    %431 = vmatpush1.msra.mxu0 0.0
    %432 = vmatprep.subr.mxu0 0.0
    %433 = vmatpush1.msra.mxu0 0.0
    %434 = vmatprep.subr.mxu0 0.0
    %435 = vmatpush1.msra.mxu0 0.0
    %436 = vmatprep.subr.mxu0 0.0
    %437 = vmatpush1.msra.mxu0 0.0
    %438 = vmatprep.subr.mxu0 0.0
    %439 = vmatpush1.msra.mxu0 0.0
    %440 = vmatprep.subr.mxu0 0.0
    %441 = vmatpush1.msra.mxu0 0.0
    %442 = vmatprep.subr.mxu0 0.0
    %443 = vmatpush1.msra.mxu0 0.0
    %444 = vmatprep.subr.mxu0 0.0
    %445 = vmatpush1.msra.mxu0 0.0
    %446 = vmatprep.subr.mxu0 0.0
    %447 = vmatpush1.msra.mxu0 0.0
    %448 = vmatprep.subr.mxu0 0.0
    %449 = vmatpush1.msra.mxu0 0.0
    %450 = vmatprep.subr.mxu0 0.0
    %451 = vmatpush1.msra.mxu0 0.0
    %452 = vmatprep.subr.mxu0 0.0
    %453 = vmatpush1.msra.mxu0 0.0
    %454 = vmatprep.subr.mxu0 0.0
    %455 = vmatpush1.msra.mxu0 0.0
    %456 = vmatprep.subr.mxu0 0.0
    %457 = vmatpush1.msra.mxu0 0.0
    %458 = vmatprep.subr.mxu0 0.0
    %459 = vmatpush1.msra.mxu0 0.0
    %460 = vmatprep.subr.mxu0 0.0
    %461 = vmatpush1.msra.mxu0 0.0
    %462 = vmatprep.subr.mxu0 0.0
    %463 = vmatpush1.msra.mxu0 0.0
    %464 = vmatprep.subr.mxu0 0.0
    %465 = vmatpush1.msra.mxu0 0.0
    %466 = vmatprep.subr.mxu0 0.0
    %467 = vmatpush1.msra.mxu0 0.0
    %468 = vmatprep.subr.mxu0 0.0
    %469 = vmatpush1.msra.mxu0 0.0
    %470 = vmatprep.subr.mxu0 0.0
    %471 = vmatpush1.msra.mxu0 0.0
    %472 = vmatprep.subr.mxu0 0.0
    %473 = vmatpush1.msra.mxu0 0.0
    %474 = vmatprep.subr.mxu0 0.0
    %475 = vmatpush1.msra.mxu0 0.0
    %476 = vmatprep.subr.mxu0 0.0
    %477 = vmatpush1.msra.mxu0 0.0
    %478 = vmatprep.subr.mxu0 0.0
    %479 = vmatpush1.msra.mxu0 0.0
    %480 = vmatprep.subr.mxu0 0.0
    %481 = vmatpush1.msra.mxu0 0.0
    %482 = vmatprep.subr.mxu0 0.0
    %483 = vmatpush1.msra.mxu0 0.0
    %484 = vmatprep.subr.mxu0 0.0
    %485 = vmatpush1.msra.mxu0 0.0
    %486 = vmatprep.subr.mxu0 0.0
    %487 = vmatpush1.msra.mxu0 0.0
    %488 = vmatprep.subr.mxu0 0.0
    %489 = vmatpush1.msra.mxu0 0.0
    %490 = vmatprep.mubr.f32.mxu0 0.0
    %491 = vmatmul.mubr.f32.gmra.mrb[0].mxu0 %v271
    %v492 = vpop.f32.mrb[0].mxu0
    %v493 = vadd.f32 0.0, %v492
    %v494 = vpop.f32.mrb[0].mxu0
    %495 = vmatprep.mubr.f32.mxu0 0.0
    %496 = vmatmul.mubr.f32.gmra.mrb[0].mxu0 %v274
    %v497 = vpop.f32.mrb[0].mxu0
    %v498 = vadd.f32 0.0, %v497
    %v499 = vpop.f32.mrb[0].mxu0
    %500 = vdwg.mxu0
    %501 = vmatprep.subr.mxu0 0.0
    %502 = vmatpush1.msra.mxu0 %v222
    %503 = vmatprep.subr.mxu0 0.0
    %504 = vmatpush1.msra.mxu0 %v227
    %505 = vmatprep.subr.mxu0 0.0
    %506 = vmatpush1.msra.mxu0 0.0
    %507 = vmatprep.subr.mxu0 0.0
    %508 = vmatpush1.msra.mxu0 0.0
    %509 = vmatprep.subr.mxu0 0.0
    %510 = vmatpush1.msra.mxu0 0.0
    %511 = vmatprep.subr.mxu0 0.0
    %512 = vmatpush1.msra.mxu0 0.0
    %513 = vmatprep.subr.mxu0 0.0
    %514 = vmatpush1.msra.mxu0 0.0
    %515 = vmatprep.subr.mxu0 0.0
    %516 = vmatpush1.msra.mxu0 0.0
    %517 = vmatprep.subr.mxu0 0.0
    %518 = vmatpush1.msra.mxu0 0.0
    %519 = vmatprep.subr.mxu0 0.0
    %520 = vmatpush1.msra.mxu0 0.0
    %521 = vmatprep.subr.mxu0 0.0
    %522 = vmatpush1.msra.mxu0 0.0
    %523 = vmatprep.subr.mxu0 0.0
    %524 = vmatpush1.msra.mxu0 0.0
    %525 = vmatprep.subr.mxu0 0.0
    %526 = vmatpush1.msra.mxu0 0.0
    %527 = vmatprep.subr.mxu0 0.0
    %528 = vmatpush1.msra.mxu0 0.0
    %529 = vmatprep.subr.mxu0 0.0
    %530 = vmatpush1.msra.mxu0 0.0
    %531 = vmatprep.subr.mxu0 0.0
    %532 = vmatpush1.msra.mxu0 0.0
    %533 = vmatprep.subr.mxu0 0.0
    %534 = vmatpush1.msra.mxu0 0.0
    %535 = vmatprep.subr.mxu0 0.0
    %536 = vmatpush1.msra.mxu0 0.0
    %537 = vmatprep.subr.mxu0 0.0
    %538 = vmatpush1.msra.mxu0 0.0
    %539 = vmatprep.subr.mxu0 0.0
    %540 = vmatpush1.msra.mxu0 0.0
    %541 = vmatprep.subr.mxu0 0.0
    %542 = vmatpush1.msra.mxu0 0.0
    %543 = vmatprep.subr.mxu0 0.0
    %544 = vmatpush1.msra.mxu0 0.0
    %545 = vmatprep.subr.mxu0 0.0
    %546 = vmatpush1.msra.mxu0 0.0
    %547 = vmatprep.subr.mxu0 0.0
    %548 = vmatpush1.msra.mxu0 0.0
    %549 = vmatprep.subr.mxu0 0.0
    %550 = vmatpush1.msra.mxu0 0.0
    %551 = vmatprep.subr.mxu0 0.0
    %552 = vmatpush1.msra.mxu0 0.0
    %553 = vmatprep.subr.mxu0 0.0
    %554 = vmatpush1.msra.mxu0 0.0
    %555 = vmatprep.subr.mxu0 0.0
    %556 = vmatpush1.msra.mxu0 0.0
    %557 = vmatprep.subr.mxu0 0.0
    %558 = vmatpush1.msra.mxu0 0.0
    %559 = vmatprep.subr.mxu0 0.0
    %560 = vmatpush1.msra.mxu0 0.0
    %561 = vmatprep.subr.mxu0 0.0
    %562 = vmatpush1.msra.mxu0 0.0
    %563 = vmatprep.subr.mxu0 0.0
    %564 = vmatpush1.msra.mxu0 0.0
    %565 = vmatprep.mubr.f32.mxu0 0.0
    %566 = vmatmul.mubr.f32.gmra.mrb[0].mxu0 %v271
    %v567 = vpop.f32.mrb[0].mxu0
    %v568 = vadd.f32 0.0, %v567
    %v569 = vpop.f32.mrb[0].mxu0
    %570 = vmatprep.mubr.f32.mxu0 0.0
    %571 = vmatmul.mubr.f32.gmra.mrb[0].mxu0 %v274
    %v572 = vpop.f32.mrb[0].mxu0
    %v573 = vadd.f32 0.0, %v572
    %v574 = vpop.f32.mrb[0].mxu0
    %575 = vdwg.mxu0
    %576 = vmatprep.subr.mxu0 0.0
    %577 = vmatpush1.msra.mxu0 %v232
    %578 = vmatprep.subr.mxu0 0.0
    %579 = vmatpush1.msra.mxu0 %v237
    %580 = vmatprep.subr.mxu0 0.0
    %581 = vmatpush1.msra.mxu0 0.0
    %582 = vmatprep.subr.mxu0 0.0
    %583 = vmatpush1.msra.mxu0 0.0
    %584 = vmatprep.subr.mxu0 0.0
    %585 = vmatpush1.msra.mxu0 0.0
    %586 = vmatprep.subr.mxu0 0.0
    %587 = vmatpush1.msra.mxu0 0.0
    %588 = vmatprep.subr.mxu0 0.0
    %589 = vmatpush1.msra.mxu0 0.0
    %590 = vmatprep.subr.mxu0 0.0
    %591 = vmatpush1.msra.mxu0 0.0
    %592 = vmatprep.subr.mxu0 0.0
    %593 = vmatpush1.msra.mxu0 0.0
    %594 = vmatprep.subr.mxu0 0.0
    %595 = vmatpush1.msra.mxu0 0.0
    %596 = vmatprep.subr.mxu0 0.0
    %597 = vmatpush1.msra.mxu0 0.0
    %598 = vmatprep.subr.mxu0 0.0
    %599 = vmatpush1.msra.mxu0 0.0
    %600 = vmatprep.subr.mxu0 0.0
    %601 = vmatpush1.msra.mxu0 0.0
    %602 = vmatprep.subr.mxu0 0.0
    %603 = vmatpush1.msra.mxu0 0.0
    %604 = vmatprep.subr.mxu0 0.0
    %605 = vmatpush1.msra.mxu0 0.0
    %606 = vmatprep.subr.mxu0 0.0
    %607 = vmatpush1.msra.mxu0 0.0
    %608 = vmatprep.subr.mxu0 0.0
    %609 = vmatpush1.msra.mxu0 0.0
    %610 = vmatprep.subr.mxu0 0.0
    %611 = vmatpush1.msra.mxu0 0.0
    %612 = vmatprep.subr.mxu0 0.0
    %613 = vmatpush1.msra.mxu0 0.0
    %614 = vmatprep.subr.mxu0 0.0
    %615 = vmatpush1.msra.mxu0 0.0
    %616 = vmatprep.subr.mxu0 0.0
    %617 = vmatpush1.msra.mxu0 0.0
    %618 = vmatprep.subr.mxu0 0.0
    %619 = vmatpush1.msra.mxu0 0.0
    %620 = vmatprep.subr.mxu0 0.0
    %621 = vmatpush1.msra.mxu0 0.0
    %622 = vmatprep.subr.mxu0 0.0
    %623 = vmatpush1.msra.mxu0 0.0
    %624 = vmatprep.subr.mxu0 0.0
    %625 = vmatpush1.msra.mxu0 0.0
    %626 = vmatprep.subr.mxu0 0.0
    %627 = vmatpush1.msra.mxu0 0.0
    %628 = vmatprep.subr.mxu0 0.0
    %629 = vmatpush1.msra.mxu0 0.0
    %630 = vmatprep.subr.mxu0 0.0
    %631 = vmatpush1.msra.mxu0 0.0
    %632 = vmatprep.subr.mxu0 0.0
    %633 = vmatpush1.msra.mxu0 0.0
    %634 = vmatprep.subr.mxu0 0.0
    %635 = vmatpush1.msra.mxu0 0.0
    %636 = vmatprep.subr.mxu0 0.0
    %637 = vmatpush1.msra.mxu0 0.0
    %638 = vmatprep.subr.mxu0 0.0
    %639 = vmatpush1.msra.mxu0 0.0
    %640 = vmatprep.mubr.f32.mxu0 0.0
    %641 = vmatmul.mubr.f32.gmra.mrb[0].mxu0 %v271
    %v642 = vpop.f32.mrb[0].mxu0
    %v643 = vadd.f32 0.0, %v642
    %v644 = vpop.f32.mrb[0].mxu0
    %645 = vmatprep.mubr.f32.mxu0 0.0
    %646 = vmatmul.mubr.f32.gmra.mrb[0].mxu0 %v274
    %v647 = vpop.f32.mrb[0].mxu0
    %v648 = vadd.f32 0.0, %v647
    %v649 = vpop.f32.mrb[0].mxu0
    %650 = vdwg.mxu0
    %651 = vmatprep.subr.mxu0 0.0
    %652 = vmatpush1.msra.mxu0 %v242
    %653 = vmatprep.subr.mxu0 0.0
    %654 = vmatpush1.msra.mxu0 %v247
    %655 = vmatprep.subr.mxu0 0.0
    %656 = vmatpush1.msra.mxu0 0.0
    %657 = vmatprep.subr.mxu0 0.0
    %658 = vmatpush1.msra.mxu0 0.0
    %659 = vmatprep.subr.mxu0 0.0
    %660 = vmatpush1.msra.mxu0 0.0
    %661 = vmatprep.subr.mxu0 0.0
    %662 = vmatpush1.msra.mxu0 0.0
    %663 = vmatprep.subr.mxu0 0.0
    %664 = vmatpush1.msra.mxu0 0.0
    %665 = vmatprep.subr.mxu0 0.0
    %666 = vmatpush1.msra.mxu0 0.0
    %667 = vmatprep.subr.mxu0 0.0
    %668 = vmatpush1.msra.mxu0 0.0
    %669 = vmatprep.subr.mxu0 0.0
    %670 = vmatpush1.msra.mxu0 0.0
    %671 = vmatprep.subr.mxu0 0.0
    %672 = vmatpush1.msra.mxu0 0.0
    %673 = vmatprep.subr.mxu0 0.0
    %674 = vmatpush1.msra.mxu0 0.0
    %675 = vmatprep.subr.mxu0 0.0
    %676 = vmatpush1.msra.mxu0 0.0
    %677 = vmatprep.subr.mxu0 0.0
    %678 = vmatpush1.msra.mxu0 0.0
    %679 = vmatprep.subr.mxu0 0.0
    %680 = vmatpush1.msra.mxu0 0.0
    %681 = vmatprep.subr.mxu0 0.0
    %682 = vmatpush1.msra.mxu0 0.0
    %683 = vmatprep.subr.mxu0 0.0
    %684 = vmatpush1.msra.mxu0 0.0
    %685 = vmatprep.subr.mxu0 0.0
    %686 = vmatpush1.msra.mxu0 0.0
    %687 = vmatprep.subr.mxu0 0.0
    %688 = vmatpush1.msra.mxu0 0.0
    %689 = vmatprep.subr.mxu0 0.0
    %690 = vmatpush1.msra.mxu0 0.0
    %691 = vmatprep.subr.mxu0 0.0
    %692 = vmatpush1.msra.mxu0 0.0
    %693 = vmatprep.subr.mxu0 0.0
    %694 = vmatpush1.msra.mxu0 0.0
    %695 = vmatprep.subr.mxu0 0.0
    %696 = vmatpush1.msra.mxu0 0.0
    %697 = vmatprep.subr.mxu0 0.0
    %698 = vmatpush1.msra.mxu0 0.0
    %699 = vmatprep.subr.mxu0 0.0
    %700 = vmatpush1.msra.mxu0 0.0
    %701 = vmatprep.subr.mxu0 0.0
    %702 = vmatpush1.msra.mxu0 0.0
    %703 = vmatprep.subr.mxu0 0.0
    %704 = vmatpush1.msra.mxu0 0.0
    %705 = vmatprep.subr.mxu0 0.0
    %706 = vmatpush1.msra.mxu0 0.0
    %707 = vmatprep.subr.mxu0 0.0
    %708 = vmatpush1.msra.mxu0 0.0
    %709 = vmatprep.subr.mxu0 0.0
    %710 = vmatpush1.msra.mxu0 0.0
    %711 = vmatprep.subr.mxu0 0.0
    %712 = vmatpush1.msra.mxu0 0.0
    %713 = vmatprep.subr.mxu0 0.0
    %714 = vmatpush1.msra.mxu0 0.0
    %715 = vmatprep.mubr.f32.mxu0 0.0
    %716 = vmatmul.mubr.f32.gmra.mrb[0].mxu0 %v271
    %v717 = vpop.f32.mrb[0].mxu0
    %v718 = vadd.f32 0.0, %v717
    %v719 = vpop.f32.mrb[0].mxu0
    %720 = vmatprep.mubr.f32.mxu0 0.0
    %721 = vmatmul.mubr.f32.gmra.mrb[0].mxu0 %v274
    %v722 = vpop.f32.mrb[0].mxu0
    %v723 = vadd.f32 0.0, %v722
    %v724 = vpop.f32.mrb[0].mxu0
    %725 = vdwg.mxu0
    %726 = vmatprep.subr.mxu0 0.0
    %727 = vmatpush1.msra.mxu0 %v252
    %728 = vmatprep.subr.mxu0 0.0
    %729 = vmatpush1.msra.mxu0 %v257
    %730 = vmatprep.subr.mxu0 0.0
    %731 = vmatpush1.msra.mxu0 0.0
    %732 = vmatprep.subr.mxu0 0.0
    %733 = vmatpush1.msra.mxu0 0.0
    %734 = vmatprep.subr.mxu0 0.0
    %735 = vmatpush1.msra.mxu0 0.0
    %736 = vmatprep.subr.mxu0 0.0
    %737 = vmatpush1.msra.mxu0 0.0
    %738 = vmatprep.subr.mxu0 0.0
    %739 = vmatpush1.msra.mxu0 0.0
    %740 = vmatprep.subr.mxu0 0.0
    %741 = vmatpush1.msra.mxu0 0.0
    %742 = vmatprep.subr.mxu0 0.0
    %743 = vmatpush1.msra.mxu0 0.0
    %744 = vmatprep.subr.mxu0 0.0
    %745 = vmatpush1.msra.mxu0 0.0
    %746 = vmatprep.subr.mxu0 0.0
    %747 = vmatpush1.msra.mxu0 0.0
    %748 = vmatprep.subr.mxu0 0.0
    %749 = vmatpush1.msra.mxu0 0.0
    %750 = vmatprep.subr.mxu0 0.0
    %751 = vmatpush1.msra.mxu0 0.0
    %752 = vmatprep.subr.mxu0 0.0
    %753 = vmatpush1.msra.mxu0 0.0
    %754 = vmatprep.subr.mxu0 0.0
    %755 = vmatpush1.msra.mxu0 0.0
    %756 = vmatprep.subr.mxu0 0.0
    %757 = vmatpush1.msra.mxu0 0.0
    %758 = vmatprep.subr.mxu0 0.0
    %759 = vmatpush1.msra.mxu0 0.0
    %760 = vmatprep.subr.mxu0 0.0
    %761 = vmatpush1.msra.mxu0 0.0
    %762 = vmatprep.subr.mxu0 0.0
    %763 = vmatpush1.msra.mxu0 0.0
    %764 = vmatprep.subr.mxu0 0.0
    %765 = vmatpush1.msra.mxu0 0.0
    %766 = vmatprep.subr.mxu0 0.0
    %767 = vmatpush1.msra.mxu0 0.0
    %768 = vmatprep.subr.mxu0 0.0
    %769 = vmatpush1.msra.mxu0 0.0
    %770 = vmatprep.subr.mxu0 0.0
    %771 = vmatpush1.msra.mxu0 0.0
    %772 = vmatprep.subr.mxu0 0.0
    %773 = vmatpush1.msra.mxu0 0.0
    %774 = vmatprep.subr.mxu0 0.0
    %775 = vmatpush1.msra.mxu0 0.0
    %776 = vmatprep.subr.mxu0 0.0
    %777 = vmatpush1.msra.mxu0 0.0
    %778 = vmatprep.subr.mxu0 0.0
    %779 = vmatpush1.msra.mxu0 0.0
    %780 = vmatprep.subr.mxu0 0.0
    %781 = vmatpush1.msra.mxu0 0.0
    %782 = vmatprep.subr.mxu0 0.0
    %783 = vmatpush1.msra.mxu0 0.0
    %784 = vmatprep.subr.mxu0 0.0
    %785 = vmatpush1.msra.mxu0 0.0
    %786 = vmatprep.subr.mxu0 0.0
    %787 = vmatpush1.msra.mxu0 0.0
    %788 = vmatprep.subr.mxu0 0.0
    %789 = vmatpush1.msra.mxu0 0.0
    %790 = vmatprep.mubr.f32.mxu0 0.0
    %791 = vmatmul.mubr.f32.gmra.mrb[0].mxu0 %v271
    %v792 = vpop.f32.mrb[0].mxu0
    %v793 = vadd.f32 0.0, %v792
    %v794 = vpop.f32.mrb[0].mxu0
    %795 = vmatprep.mubr.f32.mxu0 0.0
    %796 = vmatmul.mubr.f32.gmra.mrb[0].mxu0 %v274
    %v797 = vpop.f32.mrb[0].mxu0
    %v798 = vadd.f32 0.0, %v797
    %v799 = vpop.f32.mrb[0].mxu0
    %800 = vdwg.mxu0
    %801 = vmatprep.subr.mxu0 0.0
    %802 = vmatpush1.msra.mxu0 %v262
    %803 = vmatprep.subr.mxu0 0.0
    %804 = vmatpush1.msra.mxu0 %v267
    %805 = vmatprep.subr.mxu0 0.0
    %806 = vmatpush1.msra.mxu0 0.0
    %807 = vmatprep.subr.mxu0 0.0
    %808 = vmatpush1.msra.mxu0 0.0
    %809 = vmatprep.subr.mxu0 0.0
    %810 = vmatpush1.msra.mxu0 0.0
    %811 = vmatprep.subr.mxu0 0.0
    %812 = vmatpush1.msra.mxu0 0.0
    %813 = vmatprep.subr.mxu0 0.0
    %814 = vmatpush1.msra.mxu0 0.0
    %815 = vmatprep.subr.mxu0 0.0
    %816 = vmatpush1.msra.mxu0 0.0
    %817 = vmatprep.subr.mxu0 0.0
    %818 = vmatpush1.msra.mxu0 0.0
    %819 = vmatprep.subr.mxu0 0.0
    %820 = vmatpush1.msra.mxu0 0.0
    %821 = vmatprep.subr.mxu0 0.0
    %822 = vmatpush1.msra.mxu0 0.0
    %823 = vmatprep.subr.mxu0 0.0
    %824 = vmatpush1.msra.mxu0 0.0
    %825 = vmatprep.subr.mxu0 0.0
    %826 = vmatpush1.msra.mxu0 0.0
    %827 = vmatprep.subr.mxu0 0.0
    %828 = vmatpush1.msra.mxu0 0.0
    %829 = vmatprep.subr.mxu0 0.0
    %830 = vmatpush1.msra.mxu0 0.0
    %831 = vmatprep.subr.mxu0 0.0
    %832 = vmatpush1.msra.mxu0 0.0
    %833 = vmatprep.subr.mxu0 0.0
    %834 = vmatpush1.msra.mxu0 0.0
    %835 = vmatprep.subr.mxu0 0.0
    %836 = vmatpush1.msra.mxu0 0.0
    %837 = vmatprep.subr.mxu0 0.0
    %838 = vmatpush1.msra.mxu0 0.0
    %839 = vmatprep.subr.mxu0 0.0
    %840 = vmatpush1.msra.mxu0 0.0
    %841 = vmatprep.subr.mxu0 0.0
    %842 = vmatpush1.msra.mxu0 0.0
    %843 = vmatprep.subr.mxu0 0.0
    %844 = vmatpush1.msra.mxu0 0.0
    %845 = vmatprep.subr.mxu0 0.0
    %846 = vmatpush1.msra.mxu0 0.0
    %847 = vmatprep.subr.mxu0 0.0
    %848 = vmatpush1.msra.mxu0 0.0
    %849 = vmatprep.subr.mxu0 0.0
    %850 = vmatpush1.msra.mxu0 0.0
    %851 = vmatprep.subr.mxu0 0.0
    %852 = vmatpush1.msra.mxu0 0.0
    %853 = vmatprep.subr.mxu0 0.0
    %854 = vmatpush1.msra.mxu0 0.0
    %855 = vmatprep.subr.mxu0 0.0
    %856 = vmatpush1.msra.mxu0 0.0
    %857 = vmatprep.subr.mxu0 0.0
    %858 = vmatpush1.msra.mxu0 0.0
    %859 = vmatprep.subr.mxu0 0.0
    %860 = vmatpush1.msra.mxu0 0.0
    %861 = vmatprep.subr.mxu0 0.0
    %862 = vmatpush1.msra.mxu0 0.0
    %863 = vmatprep.subr.mxu0 0.0
    %864 = vmatpush1.msra.mxu0 0.0
    %865 = vmatprep.mubr.f32.mxu0 0.0
    %866 = vmatmul.mubr.f32.gmra.mrb[0].mxu0 %v271
    %v867 = vpop.f32.mrb[0].mxu0
    %v868 = vadd.f32 0.0, %v867
    %v869 = vpop.f32.mrb[0].mxu0
    %870 = vmatprep.mubr.f32.mxu0 0.0
    %871 = vmatmul.mubr.f32.gmra.mrb[0].mxu0 %v274
    %v872 = vpop.f32.mrb[0].mxu0
    %v873 = vadd.f32 0.0, %v872
    %v874 = vpop.f32.mrb[0].mxu0
    %875 = vdwg.mxu0
    %v876 = vmul.f32 %v343, 0.04
    %v877 = vmul.f32 %v348, 0.04
    %v878 = vmul.f32 %v418, 0.04
    %v879 = vmul.f32 %v423, 0.04
    %v880 = vmul.f32 %v493, 0.04
    %v881 = vmul.f32 %v498, 0.04
    %v882 = vmul.f32 %v568, 0.04
    %v883 = vmul.f32 %v573, 0.04
    %v884 = vmul.f32 %v643, 0.04
    %v885 = vmul.f32 %v648, 0.04
    %v886 = vmul.f32 %v718, 0.04
    %v887 = vmul.f32 %v723, 0.04
    %v888 = vmul.f32 %v793, 0.04
    %v889 = vmul.f32 %v798, 0.04
    %v890 = vmul.f32 %v868, 0.04
    %v891 = vmul.f32 %v873, 0.04
    %892 = vst.msk [vmem:[#allocation8] sm:$0xff] %vm76, %v876
    %893 = vst.msk [vmem:[#allocation8 + $0x8] sm:$0xff] %vm76, %v877
    %894 = vst.msk [vmem:[#allocation8 + $0x10] sm:$0xff] %vm76, %v878
    %895 = vst.msk [vmem:[#allocation8 + $0x18] sm:$0xff] %vm76, %v879
    %896 = vst.msk [vmem:[#allocation8 + $0x20] sm:$0xff] %vm76, %v880
    %897 = vst.msk [vmem:[#allocation8 + $0x28] sm:$0xff] %vm76, %v881
    %898 = vst.msk [vmem:[#allocation8 + $0x30] sm:$0xff] %vm76, %v882
    %899 = vst.msk [vmem:[#allocation8 + $0x38] sm:$0xff] %vm76, %v883
    %900 = vst.msk [vmem:[#allocation8 + $0x40] sm:$0xff] %vm76, %v884
    %901 = vst.msk [vmem:[#allocation8 + $0x48] sm:$0xff] %vm76, %v885
    %902 = vst.msk [vmem:[#allocation8 + $0x50] sm:$0xff] %vm76, %v886
    %903 = vst.msk [vmem:[#allocation8 + $0x58] sm:$0xff] %vm76, %v887
    %904 = vst.msk [vmem:[#allocation8 + $0x60] sm:$0xff] %vm76, %v888
    %905 = vst.msk [vmem:[#allocation8 + $0x68] sm:$0xff] %vm76, %v889
    %906 = vst.msk [vmem:[#allocation8 + $0x70] sm:$0xff] %vm76, %v890
    %907 = vst.msk [vmem:[#allocation8 + $0x78] sm:$0xff] %vm76, %v891
    // Predicated region
    $region26: #{tpu_custom_call.1} parent=1 // pred_check
      _
    $region27: #{tpu_custom_call.1} parent=1 // pred_check_branch
      %909 = sbr.rel (0) target = $region29
    $region28: #{tpu_custom_call.1} parent=1 // pred_region
      %s911 = ssub.s32 2048, 2048
      %912 = vsyncadd [#allocation4], %s911
      %s913 = sshll.u32 [#allocation8], 4
      %s914 = int_to_ptr.vmem [resolvable:$true] %s913
      %919 = dma.vmem_to_hbm [thread:$0]  %s914, 2048, %s3, [#allocation4], 128, 128, 8
    $region29: #{tpu_custom_call.1} parent=1 // pred_fallthru
      _
    // Predicated region
    $region30: #{tpu_custom_call.1} parent=1 // pred_check
      _
    $region31: #{tpu_custom_call.1} parent=1 // pred_check_branch
      %921 = sbr.rel (0) target = $region33
    $region32: #{tpu_custom_call.1} parent=1 // pred_region
      %922 = dma.done [#allocation4], 2048
    $region33: #{tpu_custom_call.1} parent=1 // pred_fallthru
      _
    %923 = vsyncpa [#allocation3], 1
    %924 = vsyncpa [#allocation6], 1
    %925 = vsyncpa [#allocation4], 1

</llo_original>
